<compile_context>
chip_gen: v5e
topology: v5e:2x2
jax: 0.10.0
libtpu: 0.0.40
codegen_flags: <defaults>
</compile_context>

<pallas_src>
import jax
import jax.numpy as jnp
from jax import lax
from jax.experimental import pallas as pl
from jax.experimental.pallas import tpu as pltpu


def _padded_bytes(shape, itemsize):
    """Bytes of one array after (8,128) tile padding of the last two dims."""
    shape = tuple(int(d) for d in shape)
    if len(shape) == 1:
        shape = (1,) + shape
    lead = 1
    for d in shape[:-2]:
        lead *= d
    sub = -(-shape[-2] // 8) * 8
    lane = -(-shape[-1] // 128) * 128
    return lead * sub * lane * itemsize


# ----------------------------------------------------------------------------
# Fused DenseLayer kernel builder
# ----------------------------------------------------------------------------
def _make_dense_layer_call(N, H, W, Cin, Cmid, K, compute_dtype):
    HW = H * W
    Cout = Cin + K
    PAD = -(-(W + 1) // 128) * 128        # 128-aligned halo for the tap slices
    LBUF = HW + 2 * PAD
    cbytes = jnp.dtype(compute_dtype).itemsize
    taps = [(dy, dx) for dy in (-1, 0, 1) for dx in (-1, 0, 1)]

    def kernel(x_ref, s1_ref, b1_ref, w1_ref, s2_ref, b2_ref, w2_ref, m_ref,
               o_ref, mbuf_ref):
        # x_ref   : (1, Cin, HW)  f32 original input (channels on sublanes)
        # s1,b1   : (Cin, 1)      folded BN1 scale/bias (f32)
        # w1_ref  : (Cmid, Cin)   1x1 conv weight (compute_dtype)
        # s2,b2   : (Cmid, 1)     folded BN2 scale/bias (f32)
        # w2_ref  : (9, K, Cmid)  3x3 conv weight, tap-major (compute_dtype)
        # m_ref   : (9, HW)       0/1 tap-validity masks (f32, static)
        # o_ref   : (1, Cout, HW) [original input ; new features]
        # mbuf_ref: (Cmid, LBUF)  staging buffer for the shifted 3x3 taps
        x = x_ref[0]                                              # (Cin, HW) f32

        # BN1 -> ReLU -> 1x1 conv (MXU) -> BN2 -> ReLU, all in VMEM/registers.
        xa = jnp.maximum(x * s1_ref[...] + b1_ref[...], 0.0)
        mid = jnp.dot(w1_ref[...], xa.astype(compute_dtype),
                      preferred_element_type=jnp.float32)         # (Cmid, HW)
        mid = jnp.maximum(mid * s2_ref[...] + b2_ref[...], 0.0)
        mid_c = mid.astype(mbuf_ref.dtype)

        # Stage mid once at a 128-aligned lane offset (dense, unmasked store).
        # The halo strips are never written: out-of-image taps are removed by
        # the where-masks below (select -> stale scratch values are harmless).
        mbuf_ref[:, PAD:PAD + HW] = mid_c

        # 3x3 conv = 9 accumulated (K,Cmid)x(Cmid,HW) dots.  Tap (dy,dx) is the
        # lane-shifted view mid[:, p + dy*W + dx]; conv zero-padding is applied
        # by masking the (K,HW) contribution of border pixels.
        acc = jnp.dot(w2_ref[4], mid_c,
                      preferred_element_type=jnp.float32)         # center tap
        for t, (dy, dx) in enumerate(taps):
            if dy == 0 and dx == 0:
                continue
            off = dy * W + dx
            shifted = mbuf_ref[:, PAD + off:PAD + off + HW]       # (Cmid, HW)
            contrib = jnp.dot(w2_ref[t], shifted,
                              preferred_element_type=jnp.float32) # (K, HW)
            valid = m_ref[t:t + 1, :] > 0.5                       # (1, HW)
            acc = acc + jnp.where(valid, contrib, jnp.zeros_like(contrib))

        # Fused channel concat: boundary on the sublane axis, lanes stay dense.
        o_ref[0, :Cin, :] = x
        o_ref[0, Cin:, :] = acc.astype(o_ref.dtype)

    flops = int(N * (2 * HW * Cin * Cmid + 9 * 2 * HW * Cmid * K))
    bytes_accessed = int(4 * N * HW * (Cin + Cout)
                         + cbytes * (Cin * Cmid + 9 * K * Cmid)
                         + 4 * (2 * Cin + 2 * Cmid + 9 * HW))

    # Per-step VMEM footprint: double-buffered in/out blocks, resident weights
    # and masks, the staging scratch, plus head-room for live intermediates.
    vmem_bytes = (2 * _padded_bytes((1, Cin, HW), 4)
                  + 2 * _padded_bytes((1, Cout, HW), 4)
                  + 2 * _padded_bytes((Cin, 1), 4)
                  + 2 * _padded_bytes((Cmid, 1), 4)
                  + _padded_bytes((Cmid, Cin), cbytes)
                  + _padded_bytes((9, K, Cmid), cbytes)
                  + _padded_bytes((9, HW), 4)
                  + _padded_bytes((Cmid, LBUF), cbytes)
                  + 3 * _padded_bytes((max(Cmid, K), HW), 4))
    vmem_limit = int(min(max(2 * vmem_bytes, 8 << 20), 64 << 20))

    grid_spec = pltpu.PrefetchScalarGridSpec(
        num_scalar_prefetch=0,
        grid=(N,),
        in_specs=[
            pl.BlockSpec((1, Cin, HW), lambda n: (n, 0, 0)),
            pl.BlockSpec((Cin, 1), lambda n: (0, 0)),
            pl.BlockSpec((Cin, 1), lambda n: (0, 0)),
            pl.BlockSpec((Cmid, Cin), lambda n: (0, 0)),
            pl.BlockSpec((Cmid, 1), lambda n: (0, 0)),
            pl.BlockSpec((Cmid, 1), lambda n: (0, 0)),
            pl.BlockSpec((9, K, Cmid), lambda n: (0, 0, 0)),
            pl.BlockSpec((9, HW), lambda n: (0, 0)),
        ],
        out_specs=pl.BlockSpec((1, Cout, HW), lambda n: (n, 0, 0)),
        scratch_shapes=[pltpu.VMEM((Cmid, LBUF), compute_dtype)],
    )

    return pl.pallas_call(
        kernel,
        out_shape=jax.ShapeDtypeStruct((N, Cout, HW), jnp.float32),
        grid_spec=grid_spec,
        compiler_params=pltpu.CompilerParams(
            dimension_semantics=("parallel",),
            vmem_limit_bytes=vmem_limit),
        cost_estimate=pl.CostEstimate(flops=flops, transcendentals=0,
                                      bytes_accessed=bytes_accessed),
    )


# ----------------------------------------------------------------------------
# DenseLayer wrapper (NCHW in / NCHW out, like PyTorch) — reshapes only.
# ----------------------------------------------------------------------------
def dense_layer_forward(x_nchw, params, drop_rate=0.0, compute_dtype=jnp.float32):
    eps = 1e-5
    g1, be1, m1, v1 = params["bn1"]
    g2, be2, m2, v2 = params["bn2"]
    w1 = params["conv1"]   # (Cmid, Cin, 1, 1)  PyTorch OIHW
    w2 = params["conv2"]   # (K, Cmid, 3, 3)    PyTorch OIHW

    N, Cin, H, W = x_nchw.shape
    Cmid = w1.shape[0]
    K = w2.shape[0]
    HW = H * W

    # Fold eval-mode BN into per-channel scale/bias column vectors (channels
    # live on the sublane axis inside the kernel).
    inv1 = g1 / jnp.sqrt(v1 + eps)
    inv2 = g2 / jnp.sqrt(v2 + eps)
    s1 = inv1.astype(jnp.float32).reshape(Cin, 1)
    b1 = (be1 - m1 * inv1).astype(jnp.float32).reshape(Cin, 1)
    s2 = inv2.astype(jnp.float32).reshape(Cmid, 1)
    b2 = (be2 - m2 * inv2).astype(jnp.float32).reshape(Cmid, 1)

    # NCHW -> (N, Cin, H*W): pure reshape, no transpose / HBM relayout.
    x_flat = x_nchw.astype(jnp.float32).reshape(N, Cin, HW)

    # 1x1 weight -> (Cmid, Cin); 3x3 weight OIHW -> tap-major (9, K, Cmid).
    w1_mat = w1[:, :, 0, 0].astype(compute_dtype)
    w2_taps = (jnp.transpose(w2, (2, 3, 0, 1))
               .reshape(9, K, Cmid).astype(compute_dtype))

    # Static 0/1 validity masks for the 9 taps (implements the conv's zero
    # padding), flattened over H*W; resident in VMEM across the whole grid.
    hh = jnp.arange(H)[:, None]
    ww = jnp.arange(W)[None, :]
    masks = []
    for dy in (-1, 0, 1):
        for dx in (-1, 0, 1):
            m = ((hh + dy >= 0) & (hh + dy < H) &
                 (ww + dx >= 0) & (ww + dx < W))
            masks.append(m.reshape(HW))
    mask_arr = jnp.stack(masks).astype(jnp.float32)               # (9, HW)

    call = _make_dense_layer_call(N, H, W, Cin, Cmid, K, compute_dtype)
    out_flat = call(x_flat, s1, b1, w1_mat, s2, b2, w2_taps, mask_arr)

    # drop_rate > 0 but inference mode -> F.dropout is identity (no-op).
    # TODO(synk): training-mode dropout would need pltpu.prng_* in-kernel.

    return out_flat.reshape(N, Cin + K, H, W).astype(x_nchw.dtype)


# ----------------------------------------------------------------------------
# Pure-JAX reference (for correctness check)
# ----------------------------------------------------------------------------
def dense_layer_reference(x_nchw, params):
    eps = 1e-5
    g1, be1, m1, v1 = params["bn1"]
    g2, be2, m2, v2 = params["bn2"]
    w1, w2 = params["conv1"], params["conv2"]

    x = x_nchw.astype(jnp.float32)
    x1 = (x - m1[None, :, None, None]) / jnp.sqrt(v1 + eps)[None, :, None, None]
    x1 = x1 * g1[None, :, None, None] + be1[None, :, None, None]
    x1 = jnp.maximum(x1, 0.0)
    y1 = lax.conv_general_dilated(x1, w1, (1, 1), "VALID",
                                  dimension_numbers=("NCHW", "OIHW", "NCHW"))
    y2 = (y1 - m2[None, :, None, None]) / jnp.sqrt(v2 + eps)[None, :, None, None]
    y2 = y2 * g2[None, :, None, None] + be2[None, :, None, None]
    y2 = jnp.maximum(y2, 0.0)
    y3 = lax.conv_general_dilated(y2, w2, (1, 1), ((1, 1), (1, 1)),
                                  dimension_numbers=("NCHW", "OIHW", "NCHW"))
    return jnp.concatenate([x_nchw, y3.astype(x_nchw.dtype)], axis=1)


if __name__ == "__main__":
    # Small shapes: in_dim=4, bn_size=4, k=8, drop_rate=0.5, input (2, 4, 16, 16)
    N, Cin, H, W = 2, 4, 16, 16
    bn_size, k = 4, 8
    Cmid = bn_size * k  # 32

    key = jax.random.PRNGKey(0)
    ks = jax.random.split(key, 10)
    x = jax.random.normal(ks[0], (N, Cin, H, W), dtype=jnp.float32)

    params = {
        "bn1": (
            jax.random.uniform(ks[1], (Cin,), minval=0.5, maxval=1.5),   # gamma
            jax.random.normal(ks[2], (Cin,)) * 0.1,                      # beta
            jax.random.normal(ks[3], (Cin,)) * 0.1,                      # running_mean
            jax.random.uniform(ks[4], (Cin,), minval=0.5, maxval=1.5),   # running_var
        ),
        "conv1": jax.random.normal(ks[5], (Cmid, Cin, 1, 1)) * 0.2,
        "bn2": (
            jax.random.uniform(ks[6], (Cmid,), minval=0.5, maxval=1.5),
            jax.random.normal(ks[7], (Cmid,)) * 0.1,
            jax.random.normal(ks[8], (Cmid,)) * 0.1,
            jax.random.uniform(ks[9], (Cmid,), minval=0.5, maxval=1.5),
        ),
        "conv2": jax.random.normal(jax.random.PRNGKey(42), (k, Cmid, 3, 3)) * 0.1,
    }

    ref = jax.block_until_ready(dense_layer_reference(x, params))

    # Exact (f32) path.
    out = jax.block_until_ready(dense_layer_forward(x, params, drop_rate=0.5))
    assert out.shape == (N, Cin + k, H, W), out.shape
    assert jnp.allclose(out, ref, atol=1e-4, rtol=1e-4), \
        float(jnp.max(jnp.abs(out - ref)))

    # bf16 MXU-operand + bf16 staging scratch path (v6e/v7x throughput mode),
    # f32 accumulation -> loosened tolerance vs the f32 PyTorch reference.
    out_bf16 = jax.block_until_ready(
        dense_layer_forward(x, params, drop_rate=0.5, compute_dtype=jnp.bfloat16))
    assert out_bf16.shape == (N, Cin + k, H, W), out_bf16.shape
    assert jnp.allclose(out_bf16, ref, atol=5e-2, rtol=5e-2), \
        float(jnp.max(jnp.abs(out_bf16 - ref)))

    print("KERNEL_OK")
</pallas_src>

<mosaic_0001>
module attributes {stable_mosaic.version = 11 : i64} {
  func.func @kernel(%arg0: i32, %arg1: memref<1x4x256xf32, #tpu.memory_space<vmem>>, %arg2: memref<4x1xf32, #tpu.memory_space<vmem>>, %arg3: memref<4x1xf32, #tpu.memory_space<vmem>>, %arg4: memref<32x4xf32, #tpu.memory_space<vmem>>, %arg5: memref<32x1xf32, #tpu.memory_space<vmem>>, %arg6: memref<32x1xf32, #tpu.memory_space<vmem>>, %arg7: memref<9x8x32xf32, #tpu.memory_space<vmem>>, %arg8: memref<9x256xf32, #tpu.memory_space<vmem>>, %arg9: memref<1x12x256xf32, #tpu.memory_space<vmem>>, %arg10: memref<32x512xf32, #tpu.memory_space<vmem>>) attributes {dimension_semantics = [#tpu.dimension_semantics<parallel>], iteration_bounds = array<i64: 2>, scalar_prefetch = 0 : i64, scratch_operands = 1 : i64, tpu.core_type = #tpu.core_type<tc>, window_params = [{transform_indices = @transform_0, window_bounds = array<i64: 1, 4, 256>}, {pipeline_mode = #tpu.pipeline_mode<synchronous>, transform_indices = @transform_1, window_bounds = array<i64: 4, 1>}, {pipeline_mode = #tpu.pipeline_mode<synchronous>, transform_indices = @transform_2, window_bounds = array<i64: 4, 1>}, {pipeline_mode = #tpu.pipeline_mode<synchronous>, transform_indices = @transform_3, window_bounds = array<i64: 32, 4>}, {pipeline_mode = #tpu.pipeline_mode<synchronous>, transform_indices = @transform_4, window_bounds = array<i64: 32, 1>}, {pipeline_mode = #tpu.pipeline_mode<synchronous>, transform_indices = @transform_5, window_bounds = array<i64: 32, 1>}, {pipeline_mode = #tpu.pipeline_mode<synchronous>, transform_indices = @transform_6, window_bounds = array<i64: 9, 8, 32>}, {pipeline_mode = #tpu.pipeline_mode<synchronous>, transform_indices = @transform_7, window_bounds = array<i64: 9, 256>}, {transform_indices = @transform_8, window_bounds = array<i64: 1, 12, 256>}]} {
    %c0 = arith.constant 0 : index
    %c0_0 = arith.constant 0 : index
    %c0_1 = arith.constant 0 : index
    %0 = vector.load %arg1[%c0, %c0_0, %c0_1] : memref<1x4x256xf32, #tpu.memory_space<vmem>>, vector<1x4x256xf32>
    %1 = vector.shape_cast %0 : vector<1x4x256xf32> to vector<4x256xf32>
    %c0_2 = arith.constant 0 : index
    %c0_3 = arith.constant 0 : index
    %2 = vector.load %arg2[%c0_2, %c0_3] : memref<4x1xf32, #tpu.memory_space<vmem>>, vector<4x1xf32>
    %3 = vector.broadcast %2 : vector<4x1xf32> to vector<4x256xf32>
    %4 = arith.mulf %1, %3 : vector<4x256xf32>
    %c0_4 = arith.constant 0 : index
    %c0_5 = arith.constant 0 : index
    %5 = vector.load %arg3[%c0_4, %c0_5] : memref<4x1xf32, #tpu.memory_space<vmem>>, vector<4x1xf32>
    %6 = vector.broadcast %5 : vector<4x1xf32> to vector<4x256xf32>
    %7 = arith.addf %4, %6 : vector<4x256xf32>
    %cst = arith.constant 0.000000e+00 : f32
    %8 = vector.broadcast %cst : f32 to vector<4x256xf32>
    %9 = arith.maximumf %7, %8 : vector<4x256xf32>
    %c0_6 = arith.constant 0 : index
    %c0_7 = arith.constant 0 : index
    %10 = vector.load %arg4[%c0_6, %c0_7] : memref<32x4xf32, #tpu.memory_space<vmem>>, vector<32x4xf32>
    %cst_8 = arith.constant dense<0.000000e+00> : vector<32x256xf32>
    %11 = tpu.matmul %10, %9, %cst_8 {dimension_numbers = #tpu.dot_dimension_numbers<[1], [0], [0], [1], [0, 0, 1, 1], [], []>} : vector<32x4xf32>, vector<4x256xf32>, vector<32x256xf32> -> vector<32x256xf32>
    %c0_9 = arith.constant 0 : index
    %c0_10 = arith.constant 0 : index
    %12 = vector.load %arg5[%c0_9, %c0_10] : memref<32x1xf32, #tpu.memory_space<vmem>>, vector<32x1xf32>
    %13 = vector.broadcast %12 : vector<32x1xf32> to vector<32x256xf32>
    %14 = arith.mulf %11, %13 : vector<32x256xf32>
    %c0_11 = arith.constant 0 : index
    %c0_12 = arith.constant 0 : index
    %15 = vector.load %arg6[%c0_11, %c0_12] : memref<32x1xf32, #tpu.memory_space<vmem>>, vector<32x1xf32>
    %16 = vector.broadcast %15 : vector<32x1xf32> to vector<32x256xf32>
    %17 = arith.addf %14, %16 : vector<32x256xf32>
    %cst_13 = arith.constant 0.000000e+00 : f32
    %18 = vector.broadcast %cst_13 : f32 to vector<32x256xf32>
    %19 = arith.maximumf %17, %18 : vector<32x256xf32>
    %c0_14 = arith.constant 0 : index
    %c128 = arith.constant 128 : index
    %20 = vector.load %arg10[%c0_14, %c128] : memref<32x512xf32, #tpu.memory_space<vmem>>, vector<32x256xf32>
    tpu.vector_store %arg10[%c0_14, %c128], %19 {strides = array<i32>} : memref<32x512xf32, #tpu.memory_space<vmem>>, vector<32x256xf32>,
    %c4 = arith.constant 4 : index
    %c0_15 = arith.constant 0 : index
    %c0_16 = arith.constant 0 : index
    %21 = vector.load %arg7[%c4, %c0_15, %c0_16] : memref<9x8x32xf32, #tpu.memory_space<vmem>>, vector<1x8x32xf32>
    %22 = vector.shape_cast %21 : vector<1x8x32xf32> to vector<8x32xf32>
    %cst_17 = arith.constant dense<0.000000e+00> : vector<8x256xf32>
    %23 = tpu.matmul %22, %19, %cst_17 {dimension_numbers = #tpu.dot_dimension_numbers<[1], [0], [0], [1], [0, 0, 1, 1], [], []>} : vector<8x32xf32>, vector<32x256xf32>, vector<8x256xf32> -> vector<8x256xf32>
    %c0_18 = arith.constant 0 : index
    %c111 = arith.constant 111 : index
    %24 = vector.load %arg10[%c0_18, %c111] : memref<32x512xf32, #tpu.memory_space<vmem>>, vector<32x256xf32>
    %c0_19 = arith.constant 0 : index
    %c0_20 = arith.constant 0 : index
    %c0_21 = arith.constant 0 : index
    %25 = vector.load %arg7[%c0_19, %c0_20, %c0_21] : memref<9x8x32xf32, #tpu.memory_space<vmem>>, vector<1x8x32xf32>
    %26 = vector.shape_cast %25 : vector<1x8x32xf32> to vector<8x32xf32>
    %cst_22 = arith.constant dense<0.000000e+00> : vector<8x256xf32>
    %27 = tpu.matmul %26, %24, %cst_22 {dimension_numbers = #tpu.dot_dimension_numbers<[1], [0], [0], [1], [0, 0, 1, 1], [], []>} : vector<8x32xf32>, vector<32x256xf32>, vector<8x256xf32> -> vector<8x256xf32>
    %c0_23 = arith.constant 0 : index
    %c0_24 = arith.constant 0 : index
    %28 = vector.load %arg8[%c0_23, %c0_24] : memref<9x256xf32, #tpu.memory_space<vmem>>, vector<1x256xf32>
    %cst_25 = arith.constant 5.000000e-01 : f32
    %29 = vector.broadcast %cst_25 : f32 to vector<1x256xf32>
    %30 = arith.cmpf ogt, %28, %29 : vector<1x256xf32>
    %cst_26 = arith.constant 0.000000e+00 : f32
    %31 = vector.broadcast %cst_26 : f32 to vector<8x256xf32>
    %32 = vector.shape_cast %30 : vector<1x256xi1> to vector<1x256xi1>
    %33 = vector.broadcast %32 : vector<1x256xi1> to vector<8x256xi1>
    %34 = arith.select %33, %27, %31 : vector<8x256xi1>, vector<8x256xf32>
    %35 = arith.addf %23, %34 : vector<8x256xf32>
    %c0_27 = arith.constant 0 : index
    %c112 = arith.constant 112 : index
    %36 = vector.load %arg10[%c0_27, %c112] : memref<32x512xf32, #tpu.memory_space<vmem>>, vector<32x256xf32>
    %c1 = arith.constant 1 : index
    %c0_28 = arith.constant 0 : index
    %c0_29 = arith.constant 0 : index
    %37 = vector.load %arg7[%c1, %c0_28, %c0_29] : memref<9x8x32xf32, #tpu.memory_space<vmem>>, vector<1x8x32xf32>
    %38 = vector.shape_cast %37 : vector<1x8x32xf32> to vector<8x32xf32>
    %cst_30 = arith.constant dense<0.000000e+00> : vector<8x256xf32>
    %39 = tpu.matmul %38, %36, %cst_30 {dimension_numbers = #tpu.dot_dimension_numbers<[1], [0], [0], [1], [0, 0, 1, 1], [], []>} : vector<8x32xf32>, vector<32x256xf32>, vector<8x256xf32> -> vector<8x256xf32>
    %c1_31 = arith.constant 1 : index
    %c0_32 = arith.constant 0 : index
    %40 = vector.load %arg8[%c1_31, %c0_32] : memref<9x256xf32, #tpu.memory_space<vmem>>, vector<1x256xf32>
    %cst_33 = arith.constant 5.000000e-01 : f32
    %41 = vector.broadcast %cst_33 : f32 to vector<1x256xf32>
    %42 = arith.cmpf ogt, %40, %41 : vector<1x256xf32>
    %cst_34 = arith.constant 0.000000e+00 : f32
    %43 = vector.broadcast %cst_34 : f32 to vector<8x256xf32>
    %44 = vector.shape_cast %42 : vector<1x256xi1> to vector<1x256xi1>
    %45 = vector.broadcast %44 : vector<1x256xi1> to vector<8x256xi1>
    %46 = arith.select %45, %39, %43 : vector<8x256xi1>, vector<8x256xf32>
    %47 = arith.addf %35, %46 : vector<8x256xf32>
    %c0_35 = arith.constant 0 : index
    %c113 = arith.constant 113 : index
    %48 = vector.load %arg10[%c0_35, %c113] : memref<32x512xf32, #tpu.memory_space<vmem>>, vector<32x256xf32>
    %c2 = arith.constant 2 : index
    %c0_36 = arith.constant 0 : index
    %c0_37 = arith.constant 0 : index
    %49 = vector.load %arg7[%c2, %c0_36, %c0_37] : memref<9x8x32xf32, #tpu.memory_space<vmem>>, vector<1x8x32xf32>
    %50 = vector.shape_cast %49 : vector<1x8x32xf32> to vector<8x32xf32>
    %cst_38 = arith.constant dense<0.000000e+00> : vector<8x256xf32>
    %51 = tpu.matmul %50, %48, %cst_38 {dimension_numbers = #tpu.dot_dimension_numbers<[1], [0], [0], [1], [0, 0, 1, 1], [], []>} : vector<8x32xf32>, vector<32x256xf32>, vector<8x256xf32> -> vector<8x256xf32>
    %c2_39 = arith.constant 2 : index
    %c0_40 = arith.constant 0 : index
    %52 = vector.load %arg8[%c2_39, %c0_40] : memref<9x256xf32, #tpu.memory_space<vmem>>, vector<1x256xf32>
    %cst_41 = arith.constant 5.000000e-01 : f32
    %53 = vector.broadcast %cst_41 : f32 to vector<1x256xf32>
    %54 = arith.cmpf ogt, %52, %53 : vector<1x256xf32>
    %cst_42 = arith.constant 0.000000e+00 : f32
    %55 = vector.broadcast %cst_42 : f32 to vector<8x256xf32>
    %56 = vector.shape_cast %54 : vector<1x256xi1> to vector<1x256xi1>
    %57 = vector.broadcast %56 : vector<1x256xi1> to vector<8x256xi1>
    %58 = arith.select %57, %51, %55 : vector<8x256xi1>, vector<8x256xf32>
    %59 = arith.addf %47, %58 : vector<8x256xf32>
    %c0_43 = arith.constant 0 : index
    %c127 = arith.constant 127 : index
    %60 = vector.load %arg10[%c0_43, %c127] : memref<32x512xf32, #tpu.memory_space<vmem>>, vector<32x256xf32>
    %c3 = arith.constant 3 : index
    %c0_44 = arith.constant 0 : index
    %c0_45 = arith.constant 0 : index
    %61 = vector.load %arg7[%c3, %c0_44, %c0_45] : memref<9x8x32xf32, #tpu.memory_space<vmem>>, vector<1x8x32xf32>
    %62 = vector.shape_cast %61 : vector<1x8x32xf32> to vector<8x32xf32>
    %cst_46 = arith.constant dense<0.000000e+00> : vector<8x256xf32>
    %63 = tpu.matmul %62, %60, %cst_46 {dimension_numbers = #tpu.dot_dimension_numbers<[1], [0], [0], [1], [0, 0, 1, 1], [], []>} : vector<8x32xf32>, vector<32x256xf32>, vector<8x256xf32> -> vector<8x256xf32>
    %c3_47 = arith.constant 3 : index
    %c0_48 = arith.constant 0 : index
    %64 = vector.load %arg8[%c3_47, %c0_48] : memref<9x256xf32, #tpu.memory_space<vmem>>, vector<1x256xf32>
    %cst_49 = arith.constant 5.000000e-01 : f32
    %65 = vector.broadcast %cst_49 : f32 to vector<1x256xf32>
    %66 = arith.cmpf ogt, %64, %65 : vector<1x256xf32>
    %cst_50 = arith.constant 0.000000e+00 : f32
    %67 = vector.broadcast %cst_50 : f32 to vector<8x256xf32>
    %68 = vector.shape_cast %66 : vector<1x256xi1> to vector<1x256xi1>
    %69 = vector.broadcast %68 : vector<1x256xi1> to vector<8x256xi1>
    %70 = arith.select %69, %63, %67 : vector<8x256xi1>, vector<8x256xf32>
    %71 = arith.addf %59, %70 : vector<8x256xf32>
    %c0_51 = arith.constant 0 : index
    %c129 = arith.constant 129 : index
    %72 = vector.load %arg10[%c0_51, %c129] : memref<32x512xf32, #tpu.memory_space<vmem>>, vector<32x256xf32>
    %c5 = arith.constant 5 : index
    %c0_52 = arith.constant 0 : index
    %c0_53 = arith.constant 0 : index
    %73 = vector.load %arg7[%c5, %c0_52, %c0_53] : memref<9x8x32xf32, #tpu.memory_space<vmem>>, vector<1x8x32xf32>
    %74 = vector.shape_cast %73 : vector<1x8x32xf32> to vector<8x32xf32>
    %cst_54 = arith.constant dense<0.000000e+00> : vector<8x256xf32>
    %75 = tpu.matmul %74, %72, %cst_54 {dimension_numbers = #tpu.dot_dimension_numbers<[1], [0], [0], [1], [0, 0, 1, 1], [], []>} : vector<8x32xf32>, vector<32x256xf32>, vector<8x256xf32> -> vector<8x256xf32>
    %c5_55 = arith.constant 5 : index
    %c0_56 = arith.constant 0 : index
    %76 = vector.load %arg8[%c5_55, %c0_56] : memref<9x256xf32, #tpu.memory_space<vmem>>, vector<1x256xf32>
    %cst_57 = arith.constant 5.000000e-01 : f32
    %77 = vector.broadcast %cst_57 : f32 to vector<1x256xf32>
    %78 = arith.cmpf ogt, %76, %77 : vector<1x256xf32>
    %cst_58 = arith.constant 0.000000e+00 : f32
    %79 = vector.broadcast %cst_58 : f32 to vector<8x256xf32>
    %80 = vector.shape_cast %78 : vector<1x256xi1> to vector<1x256xi1>
    %81 = vector.broadcast %80 : vector<1x256xi1> to vector<8x256xi1>
    %82 = arith.select %81, %75, %79 : vector<8x256xi1>, vector<8x256xf32>
    %83 = arith.addf %71, %82 : vector<8x256xf32>
    %c0_59 = arith.constant 0 : index
    %c143 = arith.constant 143 : index
    %84 = vector.load %arg10[%c0_59, %c143] : memref<32x512xf32, #tpu.memory_space<vmem>>, vector<32x256xf32>
    %c6 = arith.constant 6 : index
    %c0_60 = arith.constant 0 : index
    %c0_61 = arith.constant 0 : index
    %85 = vector.load %arg7[%c6, %c0_60, %c0_61] : memref<9x8x32xf32, #tpu.memory_space<vmem>>, vector<1x8x32xf32>
    %86 = vector.shape_cast %85 : vector<1x8x32xf32> to vector<8x32xf32>
    %cst_62 = arith.constant dense<0.000000e+00> : vector<8x256xf32>
    %87 = tpu.matmul %86, %84, %cst_62 {dimension_numbers = #tpu.dot_dimension_numbers<[1], [0], [0], [1], [0, 0, 1, 1], [], []>} : vector<8x32xf32>, vector<32x256xf32>, vector<8x256xf32> -> vector<8x256xf32>
    %c6_63 = arith.constant 6 : index
    %c0_64 = arith.constant 0 : index
    %88 = vector.load %arg8[%c6_63, %c0_64] : memref<9x256xf32, #tpu.memory_space<vmem>>, vector<1x256xf32>
    %cst_65 = arith.constant 5.000000e-01 : f32
    %89 = vector.broadcast %cst_65 : f32 to vector<1x256xf32>
    %90 = arith.cmpf ogt, %88, %89 : vector<1x256xf32>
    %cst_66 = arith.constant 0.000000e+00 : f32
    %91 = vector.broadcast %cst_66 : f32 to vector<8x256xf32>
    %92 = vector.shape_cast %90 : vector<1x256xi1> to vector<1x256xi1>
    %93 = vector.broadcast %92 : vector<1x256xi1> to vector<8x256xi1>
    %94 = arith.select %93, %87, %91 : vector<8x256xi1>, vector<8x256xf32>
    %95 = arith.addf %83, %94 : vector<8x256xf32>
    %c0_67 = arith.constant 0 : index
    %c144 = arith.constant 144 : index
    %96 = vector.load %arg10[%c0_67, %c144] : memref<32x512xf32, #tpu.memory_space<vmem>>, vector<32x256xf32>
    %c7 = arith.constant 7 : index
    %c0_68 = arith.constant 0 : index
    %c0_69 = arith.constant 0 : index
    %97 = vector.load %arg7[%c7, %c0_68, %c0_69] : memref<9x8x32xf32, #tpu.memory_space<vmem>>, vector<1x8x32xf32>
    %98 = vector.shape_cast %97 : vector<1x8x32xf32> to vector<8x32xf32>
    %cst_70 = arith.constant dense<0.000000e+00> : vector<8x256xf32>
    %99 = tpu.matmul %98, %96, %cst_70 {dimension_numbers = #tpu.dot_dimension_numbers<[1], [0], [0], [1], [0, 0, 1, 1], [], []>} : vector<8x32xf32>, vector<32x256xf32>, vector<8x256xf32> -> vector<8x256xf32>
    %c7_71 = arith.constant 7 : index
    %c0_72 = arith.constant 0 : index
    %100 = vector.load %arg8[%c7_71, %c0_72] : memref<9x256xf32, #tpu.memory_space<vmem>>, vector<1x256xf32>
    %cst_73 = arith.constant 5.000000e-01 : f32
    %101 = vector.broadcast %cst_73 : f32 to vector<1x256xf32>
    %102 = arith.cmpf ogt, %100, %101 : vector<1x256xf32>
    %cst_74 = arith.constant 0.000000e+00 : f32
    %103 = vector.broadcast %cst_74 : f32 to vector<8x256xf32>
    %104 = vector.shape_cast %102 : vector<1x256xi1> to vector<1x256xi1>
    %105 = vector.broadcast %104 : vector<1x256xi1> to vector<8x256xi1>
    %106 = arith.select %105, %99, %103 : vector<8x256xi1>, vector<8x256xf32>
    %107 = arith.addf %95, %106 : vector<8x256xf32>
    %c0_75 = arith.constant 0 : index
    %c145 = arith.constant 145 : index
    %108 = vector.load %arg10[%c0_75, %c145] : memref<32x512xf32, #tpu.memory_space<vmem>>, vector<32x256xf32>
    %c8 = arith.constant 8 : index
    %c0_76 = arith.constant 0 : index
    %c0_77 = arith.constant 0 : index
    %109 = vector.load %arg7[%c8, %c0_76, %c0_77] : memref<9x8x32xf32, #tpu.memory_space<vmem>>, vector<1x8x32xf32>
    %110 = vector.shape_cast %109 : vector<1x8x32xf32> to vector<8x32xf32>
    %cst_78 = arith.constant dense<0.000000e+00> : vector<8x256xf32>
    %111 = tpu.matmul %110, %108, %cst_78 {dimension_numbers = #tpu.dot_dimension_numbers<[1], [0], [0], [1], [0, 0, 1, 1], [], []>} : vector<8x32xf32>, vector<32x256xf32>, vector<8x256xf32> -> vector<8x256xf32>
    %c8_79 = arith.constant 8 : index
    %c0_80 = arith.constant 0 : index
    %112 = vector.load %arg8[%c8_79, %c0_80] : memref<9x256xf32, #tpu.memory_space<vmem>>, vector<1x256xf32>
    %cst_81 = arith.constant 5.000000e-01 : f32
    %113 = vector.broadcast %cst_81 : f32 to vector<1x256xf32>
    %114 = arith.cmpf ogt, %112, %113 : vector<1x256xf32>
    %cst_82 = arith.constant 0.000000e+00 : f32
    %115 = vector.broadcast %cst_82 : f32 to vector<8x256xf32>
    %116 = vector.shape_cast %114 : vector<1x256xi1> to vector<1x256xi1>
    %117 = vector.broadcast %116 : vector<1x256xi1> to vector<8x256xi1>
    %118 = arith.select %117, %111, %115 : vector<8x256xi1>, vector<8x256xf32>
    %119 = arith.addf %107, %118 : vector<8x256xf32>
    %c0_83 = arith.constant 0 : index
    %c0_84 = arith.constant 0 : index
    %c0_85 = arith.constant 0 : index
    %120 = vector.load %arg9[%c0_83, %c0_84, %c0_85] : memref<1x12x256xf32, #tpu.memory_space<vmem>>, vector<1x4x256xf32>
    %121 = vector.shape_cast %120 : vector<1x4x256xf32> to vector<4x256xf32>
    %122 = vector.shape_cast %1 : vector<4x256xf32> to vector<1x4x256xf32>
    tpu.vector_store %arg9[%c0_83, %c0_84, %c0_85], %122 {strides = array<i32>} : memref<1x12x256xf32, #tpu.memory_space<vmem>>, vector<1x4x256xf32>,
    %c0_86 = arith.constant 0 : index
    %c4_87 = arith.constant 4 : index
    %c0_88 = arith.constant 0 : index
    %123 = vector.load %arg9[%c0_86, %c4_87, %c0_88] : memref<1x12x256xf32, #tpu.memory_space<vmem>>, vector<1x8x256xf32>
    %124 = vector.shape_cast %123 : vector<1x8x256xf32> to vector<8x256xf32>
    %125 = vector.shape_cast %119 : vector<8x256xf32> to vector<1x8x256xf32>
    tpu.vector_store %arg9[%c0_86, %c4_87, %c0_88], %125 {strides = array<i32>} : memref<1x12x256xf32, #tpu.memory_space<vmem>>, vector<1x8x256xf32>,
    return
  }
  func.func @transform_0(%arg0: i32) -> (i32, i32, i32) {
    %c0_i32 = arith.constant 0 : i32
    %c0_i32_0 = arith.constant 0 : i32
    %c0_i32_1 = arith.constant 0 : i32
    return %arg0, %c0_i32, %c0_i32_0 : i32, i32, i32
  }
  func.func @transform_1(%arg0: i32) -> (i32, i32) {
    %c0_i32 = arith.constant 0 : i32
    %c0_i32_0 = arith.constant 0 : i32
    %c0_i32_1 = arith.constant 0 : i32
    return %c0_i32, %c0_i32_0 : i32, i32
  }
  func.func @transform_2(%arg0: i32) -> (i32, i32) {
    %c0_i32 = arith.constant 0 : i32
    %c0_i32_0 = arith.constant 0 : i32
    %c0_i32_1 = arith.constant 0 : i32
    return %c0_i32, %c0_i32_0 : i32, i32
  }
  func.func @transform_3(%arg0: i32) -> (i32, i32) {
    %c0_i32 = arith.constant 0 : i32
    %c0_i32_0 = arith.constant 0 : i32
    %c0_i32_1 = arith.constant 0 : i32
    return %c0_i32, %c0_i32_0 : i32, i32
  }
  func.func @transform_4(%arg0: i32) -> (i32, i32) {
    %c0_i32 = arith.constant 0 : i32
    %c0_i32_0 = arith.constant 0 : i32
    %c0_i32_1 = arith.constant 0 : i32
    return %c0_i32, %c0_i32_0 : i32, i32
  }
  func.func @transform_5(%arg0: i32) -> (i32, i32) {
    %c0_i32 = arith.constant 0 : i32
    %c0_i32_0 = arith.constant 0 : i32
    %c0_i32_1 = arith.constant 0 : i32
    return %c0_i32, %c0_i32_0 : i32, i32
  }
  func.func @transform_6(%arg0: i32) -> (i32, i32, i32) {
    %c0_i32 = arith.constant 0 : i32
    %c0_i32_0 = arith.constant 0 : i32
    %c0_i32_1 = arith.constant 0 : i32
    %c0_i32_2 = arith.constant 0 : i32
    return %c0_i32, %c0_i32_0, %c0_i32_1 : i32, i32, i32
  }
  func.func @transform_7(%arg0: i32) -> (i32, i32) {
    %c0_i32 = arith.constant 0 : i32
    %c0_i32_0 = arith.constant 0 : i32
    %c0_i32_1 = arith.constant 0 : i32
    return %c0_i32, %c0_i32_0 : i32, i32
  }
  func.func @transform_8(%arg0: i32) -> (i32, i32, i32) {
    %c0_i32 = arith.constant 0 : i32
    %c0_i32_0 = arith.constant 0 : i32
    %c0_i32_1 = arith.constant 0 : i32
    return %arg0, %c0_i32, %c0_i32_0 : i32, i32, i32
  }
}

</mosaic_0001>

<llo_original>
// kernel: tpu_custom_call.1
$region0: #{tpu_custom_call.1}
  #allocation0 [shape = 'u32[]', space=smem, size = 0x4, offset = 0x4, fixed_abs, tag = 'smem constant byte address 0x4 - core index']
  #allocation1 [shape = 'u32[72,128]{1,0:T(1,128)}', space=vmem, size = 0x9000, scoped, tag = 'internal scratch']
  #allocation2 [shape = 'f32[32,512]{1,0:T(8,128)}', space=vmem, size = 0x10000, scoped, tag = 'scratch operand']
  %s0 = inlined_call_operand.hbm [shape: f32[2,4,256], index: 0, kind: input, shape index: {}]
  %s1 = inlined_call_operand.vmem [shape: f32[4,1], index: 1, kind: input, shape index: {}]
  %s2 = inlined_call_operand.vmem [shape: f32[4,1], index: 2, kind: input, shape index: {}]
  %s3 = inlined_call_operand.vmem [shape: f32[32,4], index: 3, kind: input, shape index: {}]
  %s4 = inlined_call_operand.vmem [shape: f32[32,1], index: 4, kind: input, shape index: {}]
  %s5 = inlined_call_operand.vmem [shape: f32[32,1], index: 5, kind: input, shape index: {}]
  %s6 = inlined_call_operand.vmem [shape: f32[9,8,32], index: 6, kind: input, shape index: {}]
  %s7 = inlined_call_operand.vmem [shape: f32[9,256], index: 7, kind: input, shape index: {}]
  %s8 = inlined_call_operand.vmem [shape: f32[2,12,256], index: 8, kind: output, shape index: {}]
  %s9 = sld [smem:[#allocation0]]
  $region69: #{tpu_custom_call.1} parent=0
    _
  %s11 = ssub.s32 1, %s9
  %s12 = scalar_select 0, %s11, %s9
  $region1: #{tpu_custom_call.1} parent=0
    #allocation3 [shape = 'u8[8192]{0}', space=vmem, size = 0x2000, scoped, tag = 'input window, operand 0']
    #allocation4 [shape = 's32[2]{0}', space=sflag, size = 0x8, scoped, tag = 'scoped memory for tpu_custom_call.1']
    %13 = vsyncpa [#allocation4], 0
    %s14 = scalar_lea.sflag [#allocation4], 1
    %15 = vsyncpa %s14, 0
    loop: start=0, step=1, limit=4
    $region2: #{tpu_custom_call.1} parent=1 // loop_pre_header
      _
    $region3: #{tpu_custom_call.1} parent=1 // loop_header
      %s17 = sphi 0, %s21
      %p18 = scmp.ge.s32.totalorder %s17, 4
      %s27 = sphi 0, %s29
      %s30 = sphi 0, %s27
      %s31 = sphi 0, %s30
      %s47 = sphi 0, %s31
      %s51 = sphi 0, %s51
      %s53 = sphi 0, %s51
      %s54 = sphi 0, %s53
      %s68 = sphi 0, %s54
      %s72 = sphi 0, %s72
      %s74 = sphi 0, %s72
      %s75 = sphi 0, %s74
      %s89 = sphi 0, %s75
      %s93 = sphi 0, %s93
      %s95 = sphi 0, %s93
      %s96 = sphi 0, %s95
      %s110 = sphi 0, %s96
      %s114 = sphi 0, %s114
      %s116 = sphi 0, %s114
      %s117 = sphi 0, %s116
      %s131 = sphi 0, %s117
      %s135 = sphi 0, %s135
      %s137 = sphi 0, %s135
      %s138 = sphi 0, %s137
      %s152 = sphi 0, %s138
      %s156 = sphi 0, %s156
      %s158 = sphi 0, %s156
      %s159 = sphi 0, %s158
      %s173 = sphi 0, %s159
      %s177 = sphi 0, %s177
      %s179 = sphi 0, %s177
      %s180 = sphi 0, %s179
      %s194 = sphi 0, %s180
      %s200 = sphi 0, %s202
      %s203 = sphi 0, %s200
      %s204 = sphi 0, %s203
      %s220 = sphi 0, %s204
    $region4: #{tpu_custom_call.1} parent=1 // loop_header_branch
      %20 = sbr.rel (%p18) target = $region8
    $region5: #{tpu_custom_call.1} parent=1 // loop_body
      %s22 = ssub.s32 %s17, 1
      %s23 = ssub.s32 %s17, 2
      %s24 = sadd.s32 %s17, 1
      %s25 = ssub.s32 %s17, %s24
      %p26 = scmp.eq.s32.totalorder %s25, 0
      %s28 = sadd.s32 %s27, 1
      %s29 = scalar_select %p26, %s27, %s28
      %p32 = pneg %p26
      %p33 = scmp.eq.s32.totalorder %s17, 1
      %p34 = por %p32, %p33
      %p35 = scmp.ne.s32.totalorder %s27, %s30
      %p36 = scmp.eq.s32.totalorder %s17, 0
      %p37 = por %p35, %p36
      %p38 = scmp.ne.s32.totalorder %s27, %s30
      %p39 = scmp.eq.s32.totalorder %s22, 1
      %p40 = por %p38, %p39
      %p41 = scmp.ne.s32.totalorder %s30, %s31
      %p42 = scmp.eq.s32.totalorder %s22, 0
      %p43 = por %p41, %p42
      %p44 = scmp.ne.s32.totalorder %s30, %s31
      %p45 = scmp.eq.s32.totalorder %s23, 1
      %p46 = por %p44, %p45
      %p48 = scmp.ne.s32.totalorder %s31, %s47
      %p49 = scmp.eq.s32.totalorder %s23, 0
      %p50 = por %p48, %p49
      %s52 = sadd.s32 %s51, 1
      %p55 = scmp.eq.s32.totalorder %s17, 1
      %p56 = scmp.ne.s32.totalorder %s51, %s53
      %p57 = scmp.eq.s32.totalorder %s17, 0
      %p58 = por %p56, %p57
      %p59 = scmp.ne.s32.totalorder %s51, %s53
      %p60 = scmp.eq.s32.totalorder %s22, 1
      %p61 = por %p59, %p60
      %p62 = scmp.ne.s32.totalorder %s53, %s54
      %p63 = scmp.eq.s32.totalorder %s22, 0
      %p64 = por %p62, %p63
      %p65 = scmp.ne.s32.totalorder %s53, %s54
      %p66 = scmp.eq.s32.totalorder %s23, 1
      %p67 = por %p65, %p66
      %p69 = scmp.ne.s32.totalorder %s54, %s68
      %p70 = scmp.eq.s32.totalorder %s23, 0
      %p71 = por %p69, %p70
      %s73 = sadd.s32 %s72, 1
      %p76 = scmp.eq.s32.totalorder %s17, 1
      %p77 = scmp.ne.s32.totalorder %s72, %s74
      %p78 = scmp.eq.s32.totalorder %s17, 0
      %p79 = por %p77, %p78
      %p80 = scmp.ne.s32.totalorder %s72, %s74
      %p81 = scmp.eq.s32.totalorder %s22, 1
      %p82 = por %p80, %p81
      %p83 = scmp.ne.s32.totalorder %s74, %s75
      %p84 = scmp.eq.s32.totalorder %s22, 0
      %p85 = por %p83, %p84
      %p86 = scmp.ne.s32.totalorder %s74, %s75
      %p87 = scmp.eq.s32.totalorder %s23, 1
      %p88 = por %p86, %p87
      %p90 = scmp.ne.s32.totalorder %s75, %s89
      %p91 = scmp.eq.s32.totalorder %s23, 0
      %p92 = por %p90, %p91
      %s94 = sadd.s32 %s93, 1
      %p97 = scmp.eq.s32.totalorder %s17, 1
      %p98 = scmp.ne.s32.totalorder %s93, %s95
      %p99 = scmp.eq.s32.totalorder %s17, 0
      %p100 = por %p98, %p99
      %p101 = scmp.ne.s32.totalorder %s93, %s95
      %p102 = scmp.eq.s32.totalorder %s22, 1
      %p103 = por %p101, %p102
      %p104 = scmp.ne.s32.totalorder %s95, %s96
      %p105 = scmp.eq.s32.totalorder %s22, 0
      %p106 = por %p104, %p105
      %p107 = scmp.ne.s32.totalorder %s95, %s96
      %p108 = scmp.eq.s32.totalorder %s23, 1
      %p109 = por %p107, %p108
      %p111 = scmp.ne.s32.totalorder %s96, %s110
      %p112 = scmp.eq.s32.totalorder %s23, 0
      %p113 = por %p111, %p112
      %s115 = sadd.s32 %s114, 1
      %p118 = scmp.eq.s32.totalorder %s17, 1
      %p119 = scmp.ne.s32.totalorder %s114, %s116
      %p120 = scmp.eq.s32.totalorder %s17, 0
      %p121 = por %p119, %p120
      %p122 = scmp.ne.s32.totalorder %s114, %s116
      %p123 = scmp.eq.s32.totalorder %s22, 1
      %p124 = por %p122, %p123
      %p125 = scmp.ne.s32.totalorder %s116, %s117
      %p126 = scmp.eq.s32.totalorder %s22, 0
      %p127 = por %p125, %p126
      %p128 = scmp.ne.s32.totalorder %s116, %s117
      %p129 = scmp.eq.s32.totalorder %s23, 1
      %p130 = por %p128, %p129
      %p132 = scmp.ne.s32.totalorder %s117, %s131
      %p133 = scmp.eq.s32.totalorder %s23, 0
      %p134 = por %p132, %p133
      %s136 = sadd.s32 %s135, 1
      %p139 = scmp.eq.s32.totalorder %s17, 1
      %p140 = scmp.ne.s32.totalorder %s135, %s137
      %p141 = scmp.eq.s32.totalorder %s17, 0
      %p142 = por %p140, %p141
      %p143 = scmp.ne.s32.totalorder %s135, %s137
      %p144 = scmp.eq.s32.totalorder %s22, 1
      %p145 = por %p143, %p144
      %p146 = scmp.ne.s32.totalorder %s137, %s138
      %p147 = scmp.eq.s32.totalorder %s22, 0
      %p148 = por %p146, %p147
      %p149 = scmp.ne.s32.totalorder %s137, %s138
      %p150 = scmp.eq.s32.totalorder %s23, 1
      %p151 = por %p149, %p150
      %p153 = scmp.ne.s32.totalorder %s138, %s152
      %p154 = scmp.eq.s32.totalorder %s23, 0
      %p155 = por %p153, %p154
      %s157 = sadd.s32 %s156, 1
      %p160 = scmp.eq.s32.totalorder %s17, 1
      %p161 = scmp.ne.s32.totalorder %s156, %s158
      %p162 = scmp.eq.s32.totalorder %s17, 0
      %p163 = por %p161, %p162
      %p164 = scmp.ne.s32.totalorder %s156, %s158
      %p165 = scmp.eq.s32.totalorder %s22, 1
      %p166 = por %p164, %p165
      %p167 = scmp.ne.s32.totalorder %s158, %s159
      %p168 = scmp.eq.s32.totalorder %s22, 0
      %p169 = por %p167, %p168
      %p170 = scmp.ne.s32.totalorder %s158, %s159
      %p171 = scmp.eq.s32.totalorder %s23, 1
      %p172 = por %p170, %p171
      %p174 = scmp.ne.s32.totalorder %s159, %s173
      %p175 = scmp.eq.s32.totalorder %s23, 0
      %p176 = por %p174, %p175
      %s178 = sadd.s32 %s177, 1
      %p181 = scmp.eq.s32.totalorder %s17, 1
      %p182 = scmp.ne.s32.totalorder %s177, %s179
      %p183 = scmp.eq.s32.totalorder %s17, 0
      %p184 = por %p182, %p183
      %p185 = scmp.ne.s32.totalorder %s177, %s179
      %p186 = scmp.eq.s32.totalorder %s22, 1
      %p187 = por %p185, %p186
      %p188 = scmp.ne.s32.totalorder %s179, %s180
      %p189 = scmp.eq.s32.totalorder %s22, 0
      %p190 = por %p188, %p189
      %p191 = scmp.ne.s32.totalorder %s179, %s180
      %p192 = scmp.eq.s32.totalorder %s23, 1
      %p193 = por %p191, %p192
      %p195 = scmp.ne.s32.totalorder %s180, %s194
      %p196 = scmp.eq.s32.totalorder %s23, 0
      %p197 = por %p195, %p196
      %s198 = ssub.s32 %s17, %s24
      %p199 = scmp.eq.s32.totalorder %s198, 0
      %s201 = sadd.s32 %s200, 1
      %s202 = scalar_select %p199, %s200, %s201
      %p205 = pneg %p199
      %p206 = scmp.eq.s32.totalorder %s17, 1
      %p207 = por %p205, %p206
      %p208 = scmp.ne.s32.totalorder %s200, %s203
      %p209 = scmp.eq.s32.totalorder %s17, 0
      %p210 = por %p208, %p209
      %p211 = scmp.ne.s32.totalorder %s200, %s203
      %p212 = scmp.eq.s32.totalorder %s22, 1
      %p213 = por %p211, %p212
      %p214 = scmp.ne.s32.totalorder %s203, %s204
      %p215 = scmp.eq.s32.totalorder %s22, 0
      %p216 = por %p214, %p215
      %p217 = scmp.ne.s32.totalorder %s203, %s204
      %p218 = scmp.eq.s32.totalorder %s23, 1
      %p219 = por %p217, %p218
      %p221 = scmp.ne.s32.totalorder %s204, %s220
      %p222 = scmp.eq.s32.totalorder %s23, 0
      %p223 = por %p221, %p222
      %p224 = scmp.le.s32.totalorder 1, %s17
      %p225 = scmp.lt.s32.totalorder %s17, 3
      %p226 = pnand %p224, %p225
      %p227 = pneg %p226
      // Predicated region
      $region9: #{tpu_custom_call.1} parent=5 // pred_check
        _
      $region10: #{tpu_custom_call.1} parent=5 // pred_check_branch
        %229 = sbr.rel (%p226) target = $region12
      $region11: #{tpu_custom_call.1} parent=5 // pred_region
        %s230 = ssub.s32 %s17, 1
        // Predicated region
        $region13: #{tpu_custom_call.1} parent=11 // pred_check
          %p231 = pneg %p64
        $region14: #{tpu_custom_call.1} parent=11 // pred_check_branch
          %233 = sbr.rel (%p231) target = $region16
        $region15: #{tpu_custom_call.1} parent=11 // pred_region
          _
        $region16: #{tpu_custom_call.1} parent=11 // pred_fallthru
          _
        // Predicated region
        $region17: #{tpu_custom_call.1} parent=11 // pred_check
          %p234 = pneg %p85
        $region18: #{tpu_custom_call.1} parent=11 // pred_check_branch
          %236 = sbr.rel (%p234) target = $region20
        $region19: #{tpu_custom_call.1} parent=11 // pred_region
          _
        $region20: #{tpu_custom_call.1} parent=11 // pred_fallthru
          _
        // Predicated region
        $region21: #{tpu_custom_call.1} parent=11 // pred_check
          %p237 = pneg %p106
        $region22: #{tpu_custom_call.1} parent=11 // pred_check_branch
          %239 = sbr.rel (%p237) target = $region24
        $region23: #{tpu_custom_call.1} parent=11 // pred_region
          _
        $region24: #{tpu_custom_call.1} parent=11 // pred_fallthru
          _
        // Predicated region
        $region25: #{tpu_custom_call.1} parent=11 // pred_check
          %p240 = pneg %p127
        $region26: #{tpu_custom_call.1} parent=11 // pred_check_branch
          %242 = sbr.rel (%p240) target = $region28
        $region27: #{tpu_custom_call.1} parent=11 // pred_region
          _
        $region28: #{tpu_custom_call.1} parent=11 // pred_fallthru
          _
        // Predicated region
        $region29: #{tpu_custom_call.1} parent=11 // pred_check
          %p243 = pneg %p148
        $region30: #{tpu_custom_call.1} parent=11 // pred_check_branch
          %245 = sbr.rel (%p243) target = $region32
        $region31: #{tpu_custom_call.1} parent=11 // pred_region
          _
        $region32: #{tpu_custom_call.1} parent=11 // pred_fallthru
          _
        // Predicated region
        $region33: #{tpu_custom_call.1} parent=11 // pred_check
          %p246 = pneg %p169
        $region34: #{tpu_custom_call.1} parent=11 // pred_check_branch
          %248 = sbr.rel (%p246) target = $region36
        $region35: #{tpu_custom_call.1} parent=11 // pred_region
          _
        $region36: #{tpu_custom_call.1} parent=11 // pred_fallthru
          _
        // Predicated region
        $region37: #{tpu_custom_call.1} parent=11 // pred_check
          %p249 = pneg %p190
        $region38: #{tpu_custom_call.1} parent=11 // pred_check_branch
          %251 = sbr.rel (%p249) target = $region40
        $region39: #{tpu_custom_call.1} parent=11 // pred_region
          _
        $region40: #{tpu_custom_call.1} parent=11 // pred_fallthru
          _
      $region12: #{tpu_custom_call.1} parent=5 // pred_fallthru
        _
      %p252 = scmp.lt.s32.totalorder %s17, 2
      // Predicated region
      $region41: #{tpu_custom_call.1} parent=5 // pred_check
        %p253 = pneg %p252
      $region42: #{tpu_custom_call.1} parent=5 // pred_check_branch
        %255 = sbr.rel (%p253) target = $region44
      $region43: #{tpu_custom_call.1} parent=5 // pred_region
        // Predicated region
        $region45: #{tpu_custom_call.1} parent=43 // pred_check
          %p256 = pneg %p37
        $region46: #{tpu_custom_call.1} parent=43 // pred_check_branch
          %258 = sbr.rel (%p256) target = $region48
        $region47: #{tpu_custom_call.1} parent=43 // pred_region
          %s259 = sand.u32 %s27, 1
          %s260 = scalar_lea.sflag [#allocation4], %s259
          %s261 = sand.u32 %s27, 1
          %s262 = smul.addr %s261, 8
          %s263 = scalar_lea.vmem [#allocation3], %s262
          %265 = vsyncadd %s260, 0
          %s266 = smul.addr %s17, 2
          %s267 = smul.addr %s266, 4
          %s268 = scalar_lea.hbm %s0, %s267
          %s270 = sshll.u32 %s268, 4
          %s271 = int_to_ptr.hbm [resolvable:$true] %s270
          %s272 = sshll.u32 %s263, 4
          %s273 = int_to_ptr.vmem [resolvable:$true] %s272
          %275 = dma.hbm_to_vmem [thread:$0]  %s271, 128, %s273, %s260
        $region48: #{tpu_custom_call.1} parent=43 // pred_fallthru
          _
      $region44: #{tpu_custom_call.1} parent=5 // pred_fallthru
        _
      %p276 = scmp.le.s32.totalorder 1, %s17
      %p277 = scmp.lt.s32.totalorder %s17, 3
      %p278 = pnand %p276, %p277
      %p279 = pneg %p278
      // Predicated region
      $region49: #{tpu_custom_call.1} parent=5 // pred_check
        _
      $region50: #{tpu_custom_call.1} parent=5 // pred_check_branch
        %281 = sbr.rel (%p278) target = $region52
      $region51: #{tpu_custom_call.1} parent=5 // pred_region
        %s282 = ssub.s32 %s17, 1
        %s283 = sand.u32 %s30, 1
        %s284 = scalar_lea.sflag [#allocation4], %s283
        %s285 = sand.u32 %s30, 1
        %s286 = smul.addr %s285, 8
        %s287 = scalar_lea.vmem [#allocation3], %s286
        // Predicated region
        $region53: #{tpu_custom_call.1} parent=51 // pred_check
          %p288 = pneg %p43
        $region54: #{tpu_custom_call.1} parent=51 // pred_check_branch
          %290 = sbr.rel (%p288) target = $region56
        $region55: #{tpu_custom_call.1} parent=51 // pred_region
          %292 = dma.done %s284, 128
        $region56: #{tpu_custom_call.1} parent=51 // pred_fallthru
          _
        %s293 = sand.u32 %s30, 1
        %s294 = scalar_lea.sflag [#allocation4], %s293
        %s295 = sand.u32 %s30, 1
        %s296 = smul.addr %s295, 8
        %s297 = scalar_lea.vmem [#allocation3], %s296
        %p298 = pneg %p43
        %p299 = pneg %p40
        %p300 = pneg %p64
        %p301 = pneg %p61
        %p302 = pneg %p85
        %p303 = pneg %p82
        %p304 = pneg %p106
        %p305 = pneg %p103
        %p306 = pneg %p127
        %p307 = pneg %p124
        %p308 = pneg %p148
        %p309 = pneg %p145
        %p310 = pneg %p169
        %p311 = pneg %p166
        %p312 = pneg %p190
        %p313 = pneg %p187
        %p314 = pneg %p216
        %p315 = pneg %p213
        %p316 = scmp.lt.s32.totalorder %s22, 1
        %s317 = scalar_select %p316, %s22, 1
        %s318 = smul.addr %s317, 4
        %s319 = smul.addr %s318, 8
        %s320 = scalar_lea.vmem %s8, %s319
        %p321 = scmp.lt.s32.totalorder %s22, 1
        %s322 = scalar_select %p321, %s22, 1
        %s323 = smul.addr %s322, 4
        %s324 = smul.addr %s323, 8
        %s325 = scalar_lea.vmem %s8, %s324
        %v326 = vld [vmem:[%s287] sm:$0xff]
        %v327 = vld [vmem:[%s1] sm:$0xf]
        %329 = vset.pattern.permute.xlu0 0
        %330 = vperm.xlu0 %329, %v327
        %v331 = vpop.permute.xlu0 %330
        %v333 = vunpack.c.l.s4 839922192
        %v334 = vunpack.c.0.s8 %v333
        %v335 = vperm.slane %v331, %v334
        %v337 = vmul.f32 %v326, %v335
        %v338 = vld [vmem:[%s2] sm:$0xf]
        %340 = vset.pattern.permute.xlu0 0
        %341 = vperm.xlu0 %340, %v338
        %v342 = vpop.permute.xlu0 %341
        %v344 = vunpack.c.l.s4 839922192
        %v345 = vunpack.c.0.s8 %v344
        %v346 = vperm.slane %v342, %v345
        %v348 = vadd.f32 %v337, %v346
        %v349 = vmax.f32 %v348, 0.0
        %v350 = vld [vmem:[%s3] sm:$0xff]
        %v351 = vld [vmem:[%s3 + $0x8] sm:$0xff]
        %v352 = vld [vmem:[%s3 + $0x10] sm:$0xff]
        %v353 = vld [vmem:[%s3 + $0x18] sm:$0xff]
        %355 = vst [vmem:[#allocation1] ss:$2 sm:$0xff] %v349
        %v356 = vld.sshfl [vmem:[#allocation1] sm:$0xff pattern:$0x75316420]
        %v357 = vld.sshfl [vmem:[#allocation1 + $0x8] sm:$0xff pattern:$0x75316420]
        %vm358 = vcmask 31744
        %v360 = vsel %vm358, %v350, 0
        %v363 = vsel %vm358, %v351, 0
        %v366 = vsel %vm358, %v352, 0
        %v369 = vsel %vm358, %v353, 0
        %vm371 = vcmask 1043456
        %v372 = vsel %vm371, %v356, 0
        %v374 = vsel %vm371, %v357, 0
        %376 = vmatpush.msra.mxu0 0.0
        %377 = vmatpush.msra.mxu0 0.0
        %378 = vmatpush.msra.mxu0 0.0
        %379 = vmatpush.msra.mxu0 0.0
        %380 = vmatpush.msra.mxu0 0.0
        %381 = vmatpush.msra.mxu0 0.0
        %382 = vmatpush.msra.mxu0 0.0
        %383 = vmatpush.msra.mxu0 0.0
        %384 = vmatpush.msra.mxu0 0.0
        %385 = vmatpush.msra.mxu0 0.0
        %386 = vmatpush.msra.mxu0 0.0
        %387 = vmatpush.msra.mxu0 0.0
        %388 = vmatpush.msra.mxu0 0.0
        %389 = vmatpush.msra.mxu0 0.0
        %390 = vmatpush.msra.mxu0 0.0
        %391 = vmatpush.msra.mxu0 %v372
        %392 = vmatmul.f32.gmra.mxu0 %v360
        %v393 = vpop.f32.mrf.mxu0
        %v394 = vadd.f32 0.0, %v393
        %395 = vmatmul.f32.gmra.mxu0 %v363
        %v396 = vpop.f32.mrf.mxu0
        %v397 = vadd.f32 0.0, %v396
        %398 = vmatmul.f32.gmra.mxu0 %v366
        %v399 = vpop.f32.mrf.mxu0
        %v400 = vadd.f32 0.0, %v399
        %401 = vmatmul.f32.gmra.mxu0 %v369
        %v402 = vpop.f32.mrf.mxu0
        %v403 = vadd.f32 0.0, %v402
        %404 = vdwg.mxu0
        %405 = vmatpush.msra.mxu0 0.0
        %406 = vmatpush.msra.mxu0 0.0
        %407 = vmatpush.msra.mxu0 0.0
        %408 = vmatpush.msra.mxu0 0.0
        %409 = vmatpush.msra.mxu0 0.0
        %410 = vmatpush.msra.mxu0 0.0
        %411 = vmatpush.msra.mxu0 0.0
        %412 = vmatpush.msra.mxu0 0.0
        %413 = vmatpush.msra.mxu0 0.0
        %414 = vmatpush.msra.mxu0 0.0
        %415 = vmatpush.msra.mxu0 0.0
        %416 = vmatpush.msra.mxu0 0.0
        %417 = vmatpush.msra.mxu0 0.0
        %418 = vmatpush.msra.mxu0 0.0
        %419 = vmatpush.msra.mxu0 0.0
        %420 = vmatpush.msra.mxu0 %v374
        %421 = vmatmul.f32.gmra.mxu0 %v360
        %v422 = vpop.f32.mrf.mxu0
        %v423 = vadd.f32 0.0, %v422
        %424 = vmatmul.f32.gmra.mxu0 %v363
        %v425 = vpop.f32.mrf.mxu0
        %v426 = vadd.f32 0.0, %v425
        %427 = vmatmul.f32.gmra.mxu0 %v366
        %v428 = vpop.f32.mrf.mxu0
        %v429 = vadd.f32 0.0, %v428
        %430 = vmatmul.f32.gmra.mxu0 %v369
        %v431 = vpop.f32.mrf.mxu0
        %v432 = vadd.f32 0.0, %v431
        %433 = vdwg.mxu0
        %v434 = vld [vmem:[%s4] sm:$0xff]
        %v435 = vld [vmem:[%s4 + $0x8] sm:$0xff]
        %v436 = vld [vmem:[%s4 + $0x10] sm:$0xff]
        %v437 = vld [vmem:[%s4 + $0x18] sm:$0xff]
        %439 = vset.pattern.permute.xlu0 0
        %440 = vperm.xlu0 %439, %v434
        %v441 = vpop.permute.xlu0 %440
        %444 = vset.pattern.permute.xlu0 0
        %445 = vperm.xlu0 %444, %v435
        %v446 = vpop.permute.xlu0 %445
        %449 = vset.pattern.permute.xlu0 0
        %450 = vperm.xlu0 %449, %v436
        %v451 = vpop.permute.xlu0 %450
        %454 = vset.pattern.permute.xlu0 0
        %455 = vperm.xlu0 %454, %v437
        %v456 = vpop.permute.xlu0 %455
        %v458 = vmul.f32 %v394, %v441
        %v459 = vmul.f32 %v423, %v441
        %v460 = vmul.f32 %v397, %v446
        %v461 = vmul.f32 %v426, %v446
        %v462 = vmul.f32 %v400, %v451
        %v463 = vmul.f32 %v429, %v451
        %v464 = vmul.f32 %v403, %v456
        %v465 = vmul.f32 %v432, %v456
        %v466 = vld [vmem:[%s5] sm:$0xff]
        %v467 = vld [vmem:[%s5 + $0x8] sm:$0xff]
        %v468 = vld [vmem:[%s5 + $0x10] sm:$0xff]
        %v469 = vld [vmem:[%s5 + $0x18] sm:$0xff]
        %471 = vset.pattern.permute.xlu0 0
        %472 = vperm.xlu0 %471, %v466
        %v473 = vpop.permute.xlu0 %472
        %476 = vset.pattern.permute.xlu0 0
        %477 = vperm.xlu0 %476, %v467
        %v478 = vpop.permute.xlu0 %477
        %481 = vset.pattern.permute.xlu0 0
        %482 = vperm.xlu0 %481, %v468
        %v483 = vpop.permute.xlu0 %482
        %486 = vset.pattern.permute.xlu0 0
        %487 = vperm.xlu0 %486, %v469
        %v488 = vpop.permute.xlu0 %487
        %v490 = vadd.f32 %v458, %v473
        %v491 = vadd.f32 %v459, %v473
        %v492 = vadd.f32 %v460, %v478
        %v493 = vadd.f32 %v461, %v478
        %v494 = vadd.f32 %v462, %v483
        %v495 = vadd.f32 %v463, %v483
        %v496 = vadd.f32 %v464, %v488
        %v497 = vadd.f32 %v465, %v488
        %v498 = vmax.f32 %v490, 0.0
        %v499 = vmax.f32 %v491, 0.0
        %v500 = vmax.f32 %v492, 0.0
        %v501 = vmax.f32 %v493, 0.0
        %v502 = vmax.f32 %v494, 0.0
        %v503 = vmax.f32 %v495, 0.0
        %v504 = vmax.f32 %v496, 0.0
        %v505 = vmax.f32 %v497, 0.0
        %506 = vst [vmem:[#allocation2 + $0x8] sm:$0xff] %v498
        %507 = vst [vmem:[#allocation2 + $0x10] sm:$0xff] %v499
        %508 = vst [vmem:[#allocation2 + $0x28] sm:$0xff] %v500
        %509 = vst [vmem:[#allocation2 + $0x30] sm:$0xff] %v501
        %510 = vst [vmem:[#allocation2 + $0x48] sm:$0xff] %v502
        %511 = vst [vmem:[#allocation2 + $0x50] sm:$0xff] %v503
        %512 = vst [vmem:[#allocation2 + $0x68] sm:$0xff] %v504
        %513 = vst [vmem:[#allocation2 + $0x70] sm:$0xff] %v505
        %s514 = scalar_lea.vmem %s6, 32
        %v515 = vld [vmem:[%s514] sm:$0xff]
        %v516 = vld [vmem:[#allocation2] sm:$0xff]
        %v517 = vld [vmem:[#allocation2 + $0x8] sm:$0xff]
        %v518 = vld [vmem:[#allocation2 + $0x10] sm:$0xff]
        %v519 = vld [vmem:[#allocation2 + $0x20] sm:$0xff]
        %v520 = vld [vmem:[#allocation2 + $0x28] sm:$0xff]
        %v521 = vld [vmem:[#allocation2 + $0x30] sm:$0xff]
        %v522 = vld [vmem:[#allocation2 + $0x40] sm:$0xff]
        %v523 = vld [vmem:[#allocation2 + $0x48] sm:$0xff]
        %v524 = vld [vmem:[#allocation2 + $0x50] sm:$0xff]
        %v525 = vld [vmem:[#allocation2 + $0x60] sm:$0xff]
        %v526 = vld [vmem:[#allocation2 + $0x68] sm:$0xff]
        %v527 = vld [vmem:[#allocation2 + $0x70] sm:$0xff]
        %v528 = vld [vmem:[%s6] sm:$0xff]
        %541 = vrot.lane.b32.xlu0 %v516, 17
        %v542 = vpop.permute.xlu0 %541
        %543 = vrot.lane.b32.xlu0 %v517, 17
        %v544 = vpop.permute.xlu0 %543
        %545 = vrot.lane.b32.xlu0 %v518, 17
        %v546 = vpop.permute.xlu0 %545
        %547 = vrot.lane.b32.xlu0 %v519, 17
        %v548 = vpop.permute.xlu0 %547
        %549 = vrot.lane.b32.xlu0 %v520, 17
        %v550 = vpop.permute.xlu0 %549
        %551 = vrot.lane.b32.xlu0 %v521, 17
        %v552 = vpop.permute.xlu0 %551
        %553 = vrot.lane.b32.xlu0 %v522, 17
        %v554 = vpop.permute.xlu0 %553
        %555 = vrot.lane.b32.xlu0 %v523, 17
        %v556 = vpop.permute.xlu0 %555
        %557 = vrot.lane.b32.xlu0 %v524, 17
        %v558 = vpop.permute.xlu0 %557
        %559 = vrot.lane.b32.xlu0 %v525, 17
        %v560 = vpop.permute.xlu0 %559
        %561 = vrot.lane.b32.xlu0 %v526, 17
        %v562 = vpop.permute.xlu0 %561
        %563 = vrot.lane.b32.xlu0 %v527, 17
        %v564 = vpop.permute.xlu0 %563
        %vm565 = vcmask 138240
        %v566 = vsel %vm565, %v542, %v544
        %v567 = vsel %vm565, %v544, %v546
        %v568 = vsel %vm565, %v548, %v550
        %v569 = vsel %vm565, %v550, %v552
        %v570 = vsel %vm565, %v554, %v556
        %v571 = vsel %vm565, %v556, %v558
        %v572 = vsel %vm565, %v560, %v562
        %v573 = vsel %vm565, %v562, %v564
        %vm582 = vcmask 261120
        %v584 = vsel %vm582, %v528, 0
        %586 = vmatpush.msra.mxu0 0.0
        %587 = vmatpush.msra.mxu0 0.0
        %588 = vmatpush.msra.mxu0 0.0
        %589 = vmatpush.msra.mxu0 0.0
        %590 = vmatpush.msra.mxu0 0.0
        %591 = vmatpush.msra.mxu0 0.0
        %592 = vmatpush.msra.mxu0 0.0
        %593 = vmatpush.msra.mxu0 0.0
        %594 = vmatpush.msra.mxu0 0.0
        %595 = vmatpush.msra.mxu0 0.0
        %596 = vmatpush.msra.mxu0 0.0
        %597 = vmatpush.msra.mxu0 0.0
        %598 = vmatpush.msra.mxu0 %v572
        %599 = vmatpush.msra.mxu0 %v570
        %600 = vmatpush.msra.mxu0 %v568
        %601 = vmatpush.msra.mxu0 %v566
        %602 = vmatmul.f32.gmra.mxu0 %v584
        %v603 = vpop.f32.mrf.mxu0
        %v604 = vadd.f32 0.0, %v603
        %605 = vdwg.mxu0
        %606 = vmatpush.msra.mxu0 0.0
        %607 = vmatpush.msra.mxu0 0.0
        %608 = vmatpush.msra.mxu0 0.0
        %609 = vmatpush.msra.mxu0 0.0
        %610 = vmatpush.msra.mxu0 0.0
        %611 = vmatpush.msra.mxu0 0.0
        %612 = vmatpush.msra.mxu0 0.0
        %613 = vmatpush.msra.mxu0 0.0
        %614 = vmatpush.msra.mxu0 0.0
        %615 = vmatpush.msra.mxu0 0.0
        %616 = vmatpush.msra.mxu0 0.0
        %617 = vmatpush.msra.mxu0 0.0
        %618 = vmatpush.msra.mxu0 %v573
        %619 = vmatpush.msra.mxu0 %v571
        %620 = vmatpush.msra.mxu0 %v569
        %621 = vmatpush.msra.mxu0 %v567
        %622 = vmatmul.f32.gmra.mxu0 %v584
        %v623 = vpop.f32.mrf.mxu0
        %v624 = vadd.f32 0.0, %v623
        %625 = vdwg.mxu0
        %v626 = vld [vmem:[%s7] ss:$8 sm:$0x3]
        %vm627 = vcmp.gt.f32.partialorder %v626, 0.5
        %v628 = vsel %vm627, 1, 0
        %v629 = vperm.slane %v628, 0
        %v630 = vperm.slane %v628, 1
        %vm631 = vcmp.eq.s32.totalorder %v629, 1
        %vm632 = vcmp.eq.s32.totalorder %v630, 1
        %v633 = vsel %vm631, %v604, 0.0
        %v634 = vsel %vm632, %v624, 0.0
        %v636 = vsel %vm582, %v515, 0
        %638 = vmatpush.msra.mxu0 0.0
        %639 = vmatpush.msra.mxu0 0.0
        %640 = vmatpush.msra.mxu0 0.0
        %641 = vmatpush.msra.mxu0 0.0
        %642 = vmatpush.msra.mxu0 0.0
        %643 = vmatpush.msra.mxu0 0.0
        %644 = vmatpush.msra.mxu0 0.0
        %645 = vmatpush.msra.mxu0 0.0
        %646 = vmatpush.msra.mxu0 0.0
        %647 = vmatpush.msra.mxu0 0.0
        %648 = vmatpush.msra.mxu0 0.0
        %649 = vmatpush.msra.mxu0 0.0
        %650 = vmatpush.msra.mxu0 %v504
        %651 = vmatpush.msra.mxu0 %v502
        %652 = vmatpush.msra.mxu0 %v500
        %653 = vmatpush.msra.mxu0 %v498
        %654 = vmatmul.f32.gmra.mxu0 %v636
        %v655 = vpop.f32.mrf.mxu0
        %v656 = vadd.f32 %v633, %v655
        %657 = vdwg.mxu0
        %658 = vmatpush.msra.mxu0 0.0
        %659 = vmatpush.msra.mxu0 0.0
        %660 = vmatpush.msra.mxu0 0.0
        %661 = vmatpush.msra.mxu0 0.0
        %662 = vmatpush.msra.mxu0 0.0
        %663 = vmatpush.msra.mxu0 0.0
        %664 = vmatpush.msra.mxu0 0.0
        %665 = vmatpush.msra.mxu0 0.0
        %666 = vmatpush.msra.mxu0 0.0
        %667 = vmatpush.msra.mxu0 0.0
        %668 = vmatpush.msra.mxu0 0.0
        %669 = vmatpush.msra.mxu0 0.0
        %670 = vmatpush.msra.mxu0 %v505
        %671 = vmatpush.msra.mxu0 %v503
        %672 = vmatpush.msra.mxu0 %v501
        %673 = vmatpush.msra.mxu0 %v499
        %674 = vmatmul.f32.gmra.mxu0 %v636
        %v675 = vpop.f32.mrf.mxu0
        %v676 = vadd.f32 %v634, %v675
        %677 = vdwg.mxu0
        %s678 = scalar_lea.vmem %s6, 8
        %v679 = vld [vmem:[%s678] sm:$0xff]
        %680 = vrot.lane.b32.xlu0 %v516, 16
        %v681 = vpop.permute.xlu0 %680
        %682 = vrot.lane.b32.xlu0 %v517, 16
        %v683 = vpop.permute.xlu0 %682
        %684 = vrot.lane.b32.xlu0 %v518, 16
        %v685 = vpop.permute.xlu0 %684
        %686 = vrot.lane.b32.xlu0 %v519, 16
        %v687 = vpop.permute.xlu0 %686
        %688 = vrot.lane.b32.xlu0 %v520, 16
        %v689 = vpop.permute.xlu0 %688
        %690 = vrot.lane.b32.xlu0 %v521, 16
        %v691 = vpop.permute.xlu0 %690
        %692 = vrot.lane.b32.xlu0 %v522, 16
        %v693 = vpop.permute.xlu0 %692
        %694 = vrot.lane.b32.xlu0 %v523, 16
        %v695 = vpop.permute.xlu0 %694
        %696 = vrot.lane.b32.xlu0 %v524, 16
        %v697 = vpop.permute.xlu0 %696
        %698 = vrot.lane.b32.xlu0 %v525, 16
        %v699 = vpop.permute.xlu0 %698
        %700 = vrot.lane.b32.xlu0 %v526, 16
        %v701 = vpop.permute.xlu0 %700
        %702 = vrot.lane.b32.xlu0 %v527, 16
        %v703 = vpop.permute.xlu0 %702
        %vm704 = vcmask 130048
        %v705 = vsel %vm704, %v681, %v683
        %v706 = vsel %vm704, %v683, %v685
        %v707 = vsel %vm704, %v687, %v689
        %v708 = vsel %vm704, %v689, %v691
        %v709 = vsel %vm704, %v693, %v695
        %v710 = vsel %vm704, %v695, %v697
        %v711 = vsel %vm704, %v699, %v701
        %v712 = vsel %vm704, %v701, %v703
        %v722 = vsel %vm582, %v679, 0
        %724 = vmatpush.msra.mxu0 0.0
        %725 = vmatpush.msra.mxu0 0.0
        %726 = vmatpush.msra.mxu0 0.0
        %727 = vmatpush.msra.mxu0 0.0
        %728 = vmatpush.msra.mxu0 0.0
        %729 = vmatpush.msra.mxu0 0.0
        %730 = vmatpush.msra.mxu0 0.0
        %731 = vmatpush.msra.mxu0 0.0
        %732 = vmatpush.msra.mxu0 0.0
        %733 = vmatpush.msra.mxu0 0.0
        %734 = vmatpush.msra.mxu0 0.0
        %735 = vmatpush.msra.mxu0 0.0
        %736 = vmatpush.msra.mxu0 %v711
        %737 = vmatpush.msra.mxu0 %v709
        %738 = vmatpush.msra.mxu0 %v707
        %739 = vmatpush.msra.mxu0 %v705
        %740 = vmatmul.f32.gmra.mxu0 %v722
        %v741 = vpop.f32.mrf.mxu0
        %v742 = vadd.f32 0.0, %v741
        %743 = vdwg.mxu0
        %744 = vmatpush.msra.mxu0 0.0
        %745 = vmatpush.msra.mxu0 0.0
        %746 = vmatpush.msra.mxu0 0.0
        %747 = vmatpush.msra.mxu0 0.0
        %748 = vmatpush.msra.mxu0 0.0
        %749 = vmatpush.msra.mxu0 0.0
        %750 = vmatpush.msra.mxu0 0.0
        %751 = vmatpush.msra.mxu0 0.0
        %752 = vmatpush.msra.mxu0 0.0
        %753 = vmatpush.msra.mxu0 0.0
        %754 = vmatpush.msra.mxu0 0.0
        %755 = vmatpush.msra.mxu0 0.0
        %756 = vmatpush.msra.mxu0 %v712
        %757 = vmatpush.msra.mxu0 %v710
        %758 = vmatpush.msra.mxu0 %v708
        %759 = vmatpush.msra.mxu0 %v706
        %760 = vmatmul.f32.gmra.mxu0 %v722
        %v761 = vpop.f32.mrf.mxu0
        %v762 = vadd.f32 0.0, %v761
        %763 = vdwg.mxu0
        %s764 = scalar_lea.vmem %s7, 1
        %v765 = vld [vmem:[%s764] ss:$8 sm:$0x3]
        %vm766 = vcmp.gt.f32.partialorder %v765, 0.5
        %v767 = vsel %vm766, 1, 0
        %v768 = vperm.slane %v767, 0
        %v769 = vperm.slane %v767, 1
        %vm770 = vcmp.eq.s32.totalorder %v768, 1
        %vm771 = vcmp.eq.s32.totalorder %v769, 1
        %v772 = vsel %vm770, %v742, 0.0
        %v773 = vsel %vm771, %v762, 0.0
        %v774 = vadd.f32 %v656, %v772
        %v775 = vadd.f32 %v676, %v773
        %s776 = scalar_lea.vmem %s6, 16
        %v777 = vld [vmem:[%s776] sm:$0xff]
        %778 = vrot.lane.b32.xlu0 %v516, 15
        %v779 = vpop.permute.xlu0 %778
        %780 = vrot.lane.b32.xlu0 %v517, 15
        %v781 = vpop.permute.xlu0 %780
        %782 = vrot.lane.b32.xlu0 %v518, 15
        %v783 = vpop.permute.xlu0 %782
        %784 = vrot.lane.b32.xlu0 %v519, 15
        %v785 = vpop.permute.xlu0 %784
        %786 = vrot.lane.b32.xlu0 %v520, 15
        %v787 = vpop.permute.xlu0 %786
        %788 = vrot.lane.b32.xlu0 %v521, 15
        %v789 = vpop.permute.xlu0 %788
        %790 = vrot.lane.b32.xlu0 %v522, 15
        %v791 = vpop.permute.xlu0 %790
        %792 = vrot.lane.b32.xlu0 %v523, 15
        %v793 = vpop.permute.xlu0 %792
        %794 = vrot.lane.b32.xlu0 %v524, 15
        %v795 = vpop.permute.xlu0 %794
        %796 = vrot.lane.b32.xlu0 %v525, 15
        %v797 = vpop.permute.xlu0 %796
        %798 = vrot.lane.b32.xlu0 %v526, 15
        %v799 = vpop.permute.xlu0 %798
        %800 = vrot.lane.b32.xlu0 %v527, 15
        %v801 = vpop.permute.xlu0 %800
        %vm802 = vcmask 121856
        %v803 = vsel %vm802, %v779, %v781
        %v804 = vsel %vm802, %v781, %v783
        %v805 = vsel %vm802, %v785, %v787
        %v806 = vsel %vm802, %v787, %v789
        %v807 = vsel %vm802, %v791, %v793
        %v808 = vsel %vm802, %v793, %v795
        %v809 = vsel %vm802, %v797, %v799
        %v810 = vsel %vm802, %v799, %v801
        %v820 = vsel %vm582, %v777, 0
        %822 = vmatpush.msra.mxu0 0.0
        %823 = vmatpush.msra.mxu0 0.0
        %824 = vmatpush.msra.mxu0 0.0
        %825 = vmatpush.msra.mxu0 0.0
        %826 = vmatpush.msra.mxu0 0.0
        %827 = vmatpush.msra.mxu0 0.0
        %828 = vmatpush.msra.mxu0 0.0
        %829 = vmatpush.msra.mxu0 0.0
        %830 = vmatpush.msra.mxu0 0.0
        %831 = vmatpush.msra.mxu0 0.0
        %832 = vmatpush.msra.mxu0 0.0
        %833 = vmatpush.msra.mxu0 0.0
        %834 = vmatpush.msra.mxu0 %v809
        %835 = vmatpush.msra.mxu0 %v807
        %836 = vmatpush.msra.mxu0 %v805
        %837 = vmatpush.msra.mxu0 %v803
        %838 = vmatmul.f32.gmra.mxu0 %v820
        %v839 = vpop.f32.mrf.mxu0
        %v840 = vadd.f32 0.0, %v839
        %841 = vdwg.mxu0
        %842 = vmatpush.msra.mxu0 0.0
        %843 = vmatpush.msra.mxu0 0.0
        %844 = vmatpush.msra.mxu0 0.0
        %845 = vmatpush.msra.mxu0 0.0
        %846 = vmatpush.msra.mxu0 0.0
        %847 = vmatpush.msra.mxu0 0.0
        %848 = vmatpush.msra.mxu0 0.0
        %849 = vmatpush.msra.mxu0 0.0
        %850 = vmatpush.msra.mxu0 0.0
        %851 = vmatpush.msra.mxu0 0.0
        %852 = vmatpush.msra.mxu0 0.0
        %853 = vmatpush.msra.mxu0 0.0
        %854 = vmatpush.msra.mxu0 %v810
        %855 = vmatpush.msra.mxu0 %v808
        %856 = vmatpush.msra.mxu0 %v806
        %857 = vmatpush.msra.mxu0 %v804
        %858 = vmatmul.f32.gmra.mxu0 %v820
        %v859 = vpop.f32.mrf.mxu0
        %v860 = vadd.f32 0.0, %v859
        %861 = vdwg.mxu0
        %s862 = scalar_lea.vmem %s7, 2
        %v863 = vld [vmem:[%s862] ss:$8 sm:$0x3]
        %vm864 = vcmp.gt.f32.partialorder %v863, 0.5
        %v865 = vsel %vm864, 1, 0
        %v866 = vperm.slane %v865, 0
        %v867 = vperm.slane %v865, 1
        %vm868 = vcmp.eq.s32.totalorder %v866, 1
        %vm869 = vcmp.eq.s32.totalorder %v867, 1
        %v870 = vsel %vm868, %v840, 0.0
        %v871 = vsel %vm869, %v860, 0.0
        %v872 = vadd.f32 %v774, %v870
        %v873 = vadd.f32 %v775, %v871
        %s874 = scalar_lea.vmem %s6, 24
        %v875 = vld [vmem:[%s874] sm:$0xff]
        %876 = vrot.lane.b32.xlu0 %v516, 1
        %v877 = vpop.permute.xlu0 %876
        %878 = vrot.lane.b32.xlu0 %v517, 1
        %v879 = vpop.permute.xlu0 %878
        %880 = vrot.lane.b32.xlu0 %v518, 1
        %v881 = vpop.permute.xlu0 %880
        %882 = vrot.lane.b32.xlu0 %v519, 1
        %v883 = vpop.permute.xlu0 %882
        %884 = vrot.lane.b32.xlu0 %v520, 1
        %v885 = vpop.permute.xlu0 %884
        %886 = vrot.lane.b32.xlu0 %v521, 1
        %v887 = vpop.permute.xlu0 %886
        %888 = vrot.lane.b32.xlu0 %v522, 1
        %v889 = vpop.permute.xlu0 %888
        %890 = vrot.lane.b32.xlu0 %v523, 1
        %v891 = vpop.permute.xlu0 %890
        %892 = vrot.lane.b32.xlu0 %v524, 1
        %v893 = vpop.permute.xlu0 %892
        %894 = vrot.lane.b32.xlu0 %v525, 1
        %v895 = vpop.permute.xlu0 %894
        %896 = vrot.lane.b32.xlu0 %v526, 1
        %v897 = vpop.permute.xlu0 %896
        %898 = vrot.lane.b32.xlu0 %v527, 1
        %v899 = vpop.permute.xlu0 %898
        %vm900 = vcmask 7168
        %v901 = vsel %vm900, %v877, %v879
        %v902 = vsel %vm900, %v879, %v881
        %v903 = vsel %vm900, %v883, %v885
        %v904 = vsel %vm900, %v885, %v887
        %v905 = vsel %vm900, %v889, %v891
        %v906 = vsel %vm900, %v891, %v893
        %v907 = vsel %vm900, %v895, %v897
        %v908 = vsel %vm900, %v897, %v899
        %v918 = vsel %vm582, %v875, 0
        %920 = vmatpush.msra.mxu0 0.0
        %921 = vmatpush.msra.mxu0 0.0
        %922 = vmatpush.msra.mxu0 0.0
        %923 = vmatpush.msra.mxu0 0.0
        %924 = vmatpush.msra.mxu0 0.0
        %925 = vmatpush.msra.mxu0 0.0
        %926 = vmatpush.msra.mxu0 0.0
        %927 = vmatpush.msra.mxu0 0.0
        %928 = vmatpush.msra.mxu0 0.0
        %929 = vmatpush.msra.mxu0 0.0
        %930 = vmatpush.msra.mxu0 0.0
        %931 = vmatpush.msra.mxu0 0.0
        %932 = vmatpush.msra.mxu0 %v907
        %933 = vmatpush.msra.mxu0 %v905
        %934 = vmatpush.msra.mxu0 %v903
        %935 = vmatpush.msra.mxu0 %v901
        %936 = vmatmul.f32.gmra.mxu0 %v918
        %v937 = vpop.f32.mrf.mxu0
        %v938 = vadd.f32 0.0, %v937
        %939 = vdwg.mxu0
        %940 = vmatpush.msra.mxu0 0.0
        %941 = vmatpush.msra.mxu0 0.0
        %942 = vmatpush.msra.mxu0 0.0
        %943 = vmatpush.msra.mxu0 0.0
        %944 = vmatpush.msra.mxu0 0.0
        %945 = vmatpush.msra.mxu0 0.0
        %946 = vmatpush.msra.mxu0 0.0
        %947 = vmatpush.msra.mxu0 0.0
        %948 = vmatpush.msra.mxu0 0.0
        %949 = vmatpush.msra.mxu0 0.0
        %950 = vmatpush.msra.mxu0 0.0
        %951 = vmatpush.msra.mxu0 0.0
        %952 = vmatpush.msra.mxu0 %v908
        %953 = vmatpush.msra.mxu0 %v906
        %954 = vmatpush.msra.mxu0 %v904
        %955 = vmatpush.msra.mxu0 %v902
        %956 = vmatmul.f32.gmra.mxu0 %v918
        %v957 = vpop.f32.mrf.mxu0
        %v958 = vadd.f32 0.0, %v957
        %959 = vdwg.mxu0
        %s960 = scalar_lea.vmem %s7, 3
        %v961 = vld [vmem:[%s960] ss:$8 sm:$0x3]
        %vm962 = vcmp.gt.f32.partialorder %v961, 0.5
        %v963 = vsel %vm962, 1, 0
        %v964 = vperm.slane %v963, 0
        %v965 = vperm.slane %v963, 1
        %vm966 = vcmp.eq.s32.totalorder %v964, 1
        %vm967 = vcmp.eq.s32.totalorder %v965, 1
        %v968 = vsel %vm966, %v938, 0.0
        %v969 = vsel %vm967, %v958, 0.0
        %v970 = vadd.f32 %v872, %v968
        %v971 = vadd.f32 %v873, %v969
        %v972 = vld [vmem:[#allocation2 + $0x8] sm:$0xff]
        %v973 = vld [vmem:[#allocation2 + $0x10] sm:$0xff]
        %v974 = vld [vmem:[#allocation2 + $0x18] sm:$0xff]
        %v975 = vld [vmem:[#allocation2 + $0x28] sm:$0xff]
        %v976 = vld [vmem:[#allocation2 + $0x30] sm:$0xff]
        %v977 = vld [vmem:[#allocation2 + $0x38] sm:$0xff]
        %v978 = vld [vmem:[#allocation2 + $0x48] sm:$0xff]
        %v979 = vld [vmem:[#allocation2 + $0x50] sm:$0xff]
        %v980 = vld [vmem:[#allocation2 + $0x58] sm:$0xff]
        %v981 = vld [vmem:[#allocation2 + $0x68] sm:$0xff]
        %v982 = vld [vmem:[#allocation2 + $0x70] sm:$0xff]
        %v983 = vld [vmem:[#allocation2 + $0x78] sm:$0xff]
        %s984 = scalar_lea.vmem %s6, 40
        %v985 = vld [vmem:[%s984] sm:$0xff]
        %998 = vrot.lane.b32.xlu0 %v972, 127
        %v999 = vpop.permute.xlu0 %998
        %1000 = vrot.lane.b32.xlu0 %v973, 127
        %v1001 = vpop.permute.xlu0 %1000
        %1002 = vrot.lane.b32.xlu0 %v974, 127
        %v1003 = vpop.permute.xlu0 %1002
        %1004 = vrot.lane.b32.xlu0 %v975, 127
        %v1005 = vpop.permute.xlu0 %1004
        %1006 = vrot.lane.b32.xlu0 %v976, 127
        %v1007 = vpop.permute.xlu0 %1006
        %1008 = vrot.lane.b32.xlu0 %v977, 127
        %v1009 = vpop.permute.xlu0 %1008
        %1010 = vrot.lane.b32.xlu0 %v978, 127
        %v1011 = vpop.permute.xlu0 %1010
        %1012 = vrot.lane.b32.xlu0 %v979, 127
        %v1013 = vpop.permute.xlu0 %1012
        %1014 = vrot.lane.b32.xlu0 %v980, 127
        %v1015 = vpop.permute.xlu0 %1014
        %1016 = vrot.lane.b32.xlu0 %v981, 127
        %v1017 = vpop.permute.xlu0 %1016
        %1018 = vrot.lane.b32.xlu0 %v982, 127
        %v1019 = vpop.permute.xlu0 %1018
        %1020 = vrot.lane.b32.xlu0 %v983, 127
        %v1021 = vpop.permute.xlu0 %1020
        %vm1022 = vcmask 1039360
        %v1023 = vsel %vm1022, %v999, %v1001
        %v1024 = vsel %vm1022, %v1001, %v1003
        %v1025 = vsel %vm1022, %v1005, %v1007
        %v1026 = vsel %vm1022, %v1007, %v1009
        %v1027 = vsel %vm1022, %v1011, %v1013
        %v1028 = vsel %vm1022, %v1013, %v1015
        %v1029 = vsel %vm1022, %v1017, %v1019
        %v1030 = vsel %vm1022, %v1019, %v1021
        %v1040 = vsel %vm582, %v985, 0
        %1042 = vmatpush.msra.mxu0 0.0
        %1043 = vmatpush.msra.mxu0 0.0
        %1044 = vmatpush.msra.mxu0 0.0
        %1045 = vmatpush.msra.mxu0 0.0
        %1046 = vmatpush.msra.mxu0 0.0
        %1047 = vmatpush.msra.mxu0 0.0
        %1048 = vmatpush.msra.mxu0 0.0
        %1049 = vmatpush.msra.mxu0 0.0
        %1050 = vmatpush.msra.mxu0 0.0
        %1051 = vmatpush.msra.mxu0 0.0
        %1052 = vmatpush.msra.mxu0 0.0
        %1053 = vmatpush.msra.mxu0 0.0
        %1054 = vmatpush.msra.mxu0 %v1029
        %1055 = vmatpush.msra.mxu0 %v1027
        %1056 = vmatpush.msra.mxu0 %v1025
        %1057 = vmatpush.msra.mxu0 %v1023
        %1058 = vmatmul.f32.gmra.mxu0 %v1040
        %v1059 = vpop.f32.mrf.mxu0
        %v1060 = vadd.f32 0.0, %v1059
        %1061 = vdwg.mxu0
        %1062 = vmatpush.msra.mxu0 0.0
        %1063 = vmatpush.msra.mxu0 0.0
        %1064 = vmatpush.msra.mxu0 0.0
        %1065 = vmatpush.msra.mxu0 0.0
        %1066 = vmatpush.msra.mxu0 0.0
        %1067 = vmatpush.msra.mxu0 0.0
        %1068 = vmatpush.msra.mxu0 0.0
        %1069 = vmatpush.msra.mxu0 0.0
        %1070 = vmatpush.msra.mxu0 0.0
        %1071 = vmatpush.msra.mxu0 0.0
        %1072 = vmatpush.msra.mxu0 0.0
        %1073 = vmatpush.msra.mxu0 0.0
        %1074 = vmatpush.msra.mxu0 %v1030
        %1075 = vmatpush.msra.mxu0 %v1028
        %1076 = vmatpush.msra.mxu0 %v1026
        %1077 = vmatpush.msra.mxu0 %v1024
        %1078 = vmatmul.f32.gmra.mxu0 %v1040
        %v1079 = vpop.f32.mrf.mxu0
        %v1080 = vadd.f32 0.0, %v1079
        %1081 = vdwg.mxu0
        %s1082 = scalar_lea.vmem %s7, 5
        %v1083 = vld [vmem:[%s1082] ss:$8 sm:$0x3]
        %vm1084 = vcmp.gt.f32.partialorder %v1083, 0.5
        %v1085 = vsel %vm1084, 1, 0
        %v1086 = vperm.slane %v1085, 0
        %v1087 = vperm.slane %v1085, 1
        %vm1088 = vcmp.eq.s32.totalorder %v1086, 1
        %vm1089 = vcmp.eq.s32.totalorder %v1087, 1
        %v1090 = vsel %vm1088, %v1060, 0.0
        %v1091 = vsel %vm1089, %v1080, 0.0
        %v1092 = vadd.f32 %v970, %v1090
        %v1093 = vadd.f32 %v971, %v1091
        %s1094 = scalar_lea.vmem %s6, 48
        %v1095 = vld [vmem:[%s1094] sm:$0xff]
        %1096 = vrot.lane.b32.xlu0 %v972, 113
        %v1097 = vpop.permute.xlu0 %1096
        %1098 = vrot.lane.b32.xlu0 %v973, 113
        %v1099 = vpop.permute.xlu0 %1098
        %1100 = vrot.lane.b32.xlu0 %v974, 113
        %v1101 = vpop.permute.xlu0 %1100
        %1102 = vrot.lane.b32.xlu0 %v975, 113
        %v1103 = vpop.permute.xlu0 %1102
        %1104 = vrot.lane.b32.xlu0 %v976, 113
        %v1105 = vpop.permute.xlu0 %1104
        %1106 = vrot.lane.b32.xlu0 %v977, 113
        %v1107 = vpop.permute.xlu0 %1106
        %1108 = vrot.lane.b32.xlu0 %v978, 113
        %v1109 = vpop.permute.xlu0 %1108
        %1110 = vrot.lane.b32.xlu0 %v979, 113
        %v1111 = vpop.permute.xlu0 %1110
        %1112 = vrot.lane.b32.xlu0 %v980, 113
        %v1113 = vpop.permute.xlu0 %1112
        %1114 = vrot.lane.b32.xlu0 %v981, 113
        %v1115 = vpop.permute.xlu0 %1114
        %1116 = vrot.lane.b32.xlu0 %v982, 113
        %v1117 = vpop.permute.xlu0 %1116
        %1118 = vrot.lane.b32.xlu0 %v983, 113
        %v1119 = vpop.permute.xlu0 %1118
        %vm1120 = vcmask 924672
        %v1121 = vsel %vm1120, %v1097, %v1099
        %v1122 = vsel %vm1120, %v1099, %v1101
        %v1123 = vsel %vm1120, %v1103, %v1105
        %v1124 = vsel %vm1120, %v1105, %v1107
        %v1125 = vsel %vm1120, %v1109, %v1111
        %v1126 = vsel %vm1120, %v1111, %v1113
        %v1127 = vsel %vm1120, %v1115, %v1117
        %v1128 = vsel %vm1120, %v1117, %v1119
        %v1138 = vsel %vm582, %v1095, 0
        %1140 = vmatpush.msra.mxu0 0.0
        %1141 = vmatpush.msra.mxu0 0.0
        %1142 = vmatpush.msra.mxu0 0.0
        %1143 = vmatpush.msra.mxu0 0.0
        %1144 = vmatpush.msra.mxu0 0.0
        %1145 = vmatpush.msra.mxu0 0.0
        %1146 = vmatpush.msra.mxu0 0.0
        %1147 = vmatpush.msra.mxu0 0.0
        %1148 = vmatpush.msra.mxu0 0.0
        %1149 = vmatpush.msra.mxu0 0.0
        %1150 = vmatpush.msra.mxu0 0.0
        %1151 = vmatpush.msra.mxu0 0.0
        %1152 = vmatpush.msra.mxu0 %v1127
        %1153 = vmatpush.msra.mxu0 %v1125
        %1154 = vmatpush.msra.mxu0 %v1123
        %1155 = vmatpush.msra.mxu0 %v1121
        %1156 = vmatmul.f32.gmra.mxu0 %v1138
        %v1157 = vpop.f32.mrf.mxu0
        %v1158 = vadd.f32 0.0, %v1157
        %1159 = vdwg.mxu0
        %1160 = vmatpush.msra.mxu0 0.0
        %1161 = vmatpush.msra.mxu0 0.0
        %1162 = vmatpush.msra.mxu0 0.0
        %1163 = vmatpush.msra.mxu0 0.0
        %1164 = vmatpush.msra.mxu0 0.0
        %1165 = vmatpush.msra.mxu0 0.0
        %1166 = vmatpush.msra.mxu0 0.0
        %1167 = vmatpush.msra.mxu0 0.0
        %1168 = vmatpush.msra.mxu0 0.0
        %1169 = vmatpush.msra.mxu0 0.0
        %1170 = vmatpush.msra.mxu0 0.0
        %1171 = vmatpush.msra.mxu0 0.0
        %1172 = vmatpush.msra.mxu0 %v1128
        %1173 = vmatpush.msra.mxu0 %v1126
        %1174 = vmatpush.msra.mxu0 %v1124
        %1175 = vmatpush.msra.mxu0 %v1122
        %1176 = vmatmul.f32.gmra.mxu0 %v1138
        %v1177 = vpop.f32.mrf.mxu0
        %v1178 = vadd.f32 0.0, %v1177
        %1179 = vdwg.mxu0
        %s1180 = scalar_lea.vmem %s7, 6
        %v1181 = vld [vmem:[%s1180] ss:$8 sm:$0x3]
        %vm1182 = vcmp.gt.f32.partialorder %v1181, 0.5
        %v1183 = vsel %vm1182, 1, 0
        %v1184 = vperm.slane %v1183, 0
        %v1185 = vperm.slane %v1183, 1
        %vm1186 = vcmp.eq.s32.totalorder %v1184, 1
        %vm1187 = vcmp.eq.s32.totalorder %v1185, 1
        %v1188 = vsel %vm1186, %v1158, 0.0
        %v1189 = vsel %vm1187, %v1178, 0.0
        %v1190 = vadd.f32 %v1092, %v1188
        %v1191 = vadd.f32 %v1093, %v1189
        %s1192 = scalar_lea.vmem %s6, 56
        %v1193 = vld [vmem:[%s1192] sm:$0xff]
        %1194 = vrot.lane.b32.xlu0 %v972, 112
        %v1195 = vpop.permute.xlu0 %1194
        %1196 = vrot.lane.b32.xlu0 %v973, 112
        %v1197 = vpop.permute.xlu0 %1196
        %1198 = vrot.lane.b32.xlu0 %v974, 112
        %v1199 = vpop.permute.xlu0 %1198
        %1200 = vrot.lane.b32.xlu0 %v975, 112
        %v1201 = vpop.permute.xlu0 %1200
        %1202 = vrot.lane.b32.xlu0 %v976, 112
        %v1203 = vpop.permute.xlu0 %1202
        %1204 = vrot.lane.b32.xlu0 %v977, 112
        %v1205 = vpop.permute.xlu0 %1204
        %1206 = vrot.lane.b32.xlu0 %v978, 112
        %v1207 = vpop.permute.xlu0 %1206
        %1208 = vrot.lane.b32.xlu0 %v979, 112
        %v1209 = vpop.permute.xlu0 %1208
        %1210 = vrot.lane.b32.xlu0 %v980, 112
        %v1211 = vpop.permute.xlu0 %1210
        %1212 = vrot.lane.b32.xlu0 %v981, 112
        %v1213 = vpop.permute.xlu0 %1212
        %1214 = vrot.lane.b32.xlu0 %v982, 112
        %v1215 = vpop.permute.xlu0 %1214
        %1216 = vrot.lane.b32.xlu0 %v983, 112
        %v1217 = vpop.permute.xlu0 %1216
        %vm1218 = vcmask 916480
        %v1219 = vsel %vm1218, %v1195, %v1197
        %v1220 = vsel %vm1218, %v1197, %v1199
        %v1221 = vsel %vm1218, %v1201, %v1203
        %v1222 = vsel %vm1218, %v1203, %v1205
        %v1223 = vsel %vm1218, %v1207, %v1209
        %v1224 = vsel %vm1218, %v1209, %v1211
        %v1225 = vsel %vm1218, %v1213, %v1215
        %v1226 = vsel %vm1218, %v1215, %v1217
        %v1236 = vsel %vm582, %v1193, 0
        %1238 = vmatpush.msra.mxu0 0.0
        %1239 = vmatpush.msra.mxu0 0.0
        %1240 = vmatpush.msra.mxu0 0.0
        %1241 = vmatpush.msra.mxu0 0.0
        %1242 = vmatpush.msra.mxu0 0.0
        %1243 = vmatpush.msra.mxu0 0.0
        %1244 = vmatpush.msra.mxu0 0.0
        %1245 = vmatpush.msra.mxu0 0.0
        %1246 = vmatpush.msra.mxu0 0.0
        %1247 = vmatpush.msra.mxu0 0.0
        %1248 = vmatpush.msra.mxu0 0.0
        %1249 = vmatpush.msra.mxu0 0.0
        %1250 = vmatpush.msra.mxu0 %v1225
        %1251 = vmatpush.msra.mxu0 %v1223
        %1252 = vmatpush.msra.mxu0 %v1221
        %1253 = vmatpush.msra.mxu0 %v1219
        %1254 = vmatmul.f32.gmra.mxu0 %v1236
        %v1255 = vpop.f32.mrf.mxu0
        %v1256 = vadd.f32 0.0, %v1255
        %1257 = vdwg.mxu0
        %1258 = vmatpush.msra.mxu0 0.0
        %1259 = vmatpush.msra.mxu0 0.0
        %1260 = vmatpush.msra.mxu0 0.0
        %1261 = vmatpush.msra.mxu0 0.0
        %1262 = vmatpush.msra.mxu0 0.0
        %1263 = vmatpush.msra.mxu0 0.0
        %1264 = vmatpush.msra.mxu0 0.0
        %1265 = vmatpush.msra.mxu0 0.0
        %1266 = vmatpush.msra.mxu0 0.0
        %1267 = vmatpush.msra.mxu0 0.0
        %1268 = vmatpush.msra.mxu0 0.0
        %1269 = vmatpush.msra.mxu0 0.0
        %1270 = vmatpush.msra.mxu0 %v1226
        %1271 = vmatpush.msra.mxu0 %v1224
        %1272 = vmatpush.msra.mxu0 %v1222
        %1273 = vmatpush.msra.mxu0 %v1220
        %1274 = vmatmul.f32.gmra.mxu0 %v1236
        %v1275 = vpop.f32.mrf.mxu0
        %v1276 = vadd.f32 0.0, %v1275
        %1277 = vdwg.mxu0
        %s1278 = scalar_lea.vmem %s7, 7
        %v1279 = vld [vmem:[%s1278] ss:$8 sm:$0x3]
        %vm1280 = vcmp.gt.f32.partialorder %v1279, 0.5
        %v1281 = vsel %vm1280, 1, 0
        %v1282 = vperm.slane %v1281, 0
        %v1283 = vperm.slane %v1281, 1
        %vm1284 = vcmp.eq.s32.totalorder %v1282, 1
        %vm1285 = vcmp.eq.s32.totalorder %v1283, 1
        %v1286 = vsel %vm1284, %v1256, 0.0
        %v1287 = vsel %vm1285, %v1276, 0.0
        %v1288 = vadd.f32 %v1190, %v1286
        %v1289 = vadd.f32 %v1191, %v1287
        %s1290 = scalar_lea.vmem %s6, 64
        %v1291 = vld [vmem:[%s1290] sm:$0xff]
        %1292 = vrot.lane.b32.xlu0 %v972, 111
        %v1293 = vpop.permute.xlu0 %1292
        %1294 = vrot.lane.b32.xlu0 %v973, 111
        %v1295 = vpop.permute.xlu0 %1294
        %1296 = vrot.lane.b32.xlu0 %v974, 111
        %v1297 = vpop.permute.xlu0 %1296
        %1298 = vrot.lane.b32.xlu0 %v975, 111
        %v1299 = vpop.permute.xlu0 %1298
        %1300 = vrot.lane.b32.xlu0 %v976, 111
        %v1301 = vpop.permute.xlu0 %1300
        %1302 = vrot.lane.b32.xlu0 %v977, 111
        %v1303 = vpop.permute.xlu0 %1302
        %1304 = vrot.lane.b32.xlu0 %v978, 111
        %v1305 = vpop.permute.xlu0 %1304
        %1306 = vrot.lane.b32.xlu0 %v979, 111
        %v1307 = vpop.permute.xlu0 %1306
        %1308 = vrot.lane.b32.xlu0 %v980, 111
        %v1309 = vpop.permute.xlu0 %1308
        %1310 = vrot.lane.b32.xlu0 %v981, 111
        %v1311 = vpop.permute.xlu0 %1310
        %1312 = vrot.lane.b32.xlu0 %v982, 111
        %v1313 = vpop.permute.xlu0 %1312
        %1314 = vrot.lane.b32.xlu0 %v983, 111
        %v1315 = vpop.permute.xlu0 %1314
        %vm1316 = vcmask 908288
        %v1317 = vsel %vm1316, %v1293, %v1295
        %v1318 = vsel %vm1316, %v1295, %v1297
        %v1319 = vsel %vm1316, %v1299, %v1301
        %v1320 = vsel %vm1316, %v1301, %v1303
        %v1321 = vsel %vm1316, %v1305, %v1307
        %v1322 = vsel %vm1316, %v1307, %v1309
        %v1323 = vsel %vm1316, %v1311, %v1313
        %v1324 = vsel %vm1316, %v1313, %v1315
        %v1334 = vsel %vm582, %v1291, 0
        %1336 = vmatpush.msra.mxu0 0.0
        %1337 = vmatpush.msra.mxu0 0.0
        %1338 = vmatpush.msra.mxu0 0.0
        %1339 = vmatpush.msra.mxu0 0.0
        %1340 = vmatpush.msra.mxu0 0.0
        %1341 = vmatpush.msra.mxu0 0.0
        %1342 = vmatpush.msra.mxu0 0.0
        %1343 = vmatpush.msra.mxu0 0.0
        %1344 = vmatpush.msra.mxu0 0.0
        %1345 = vmatpush.msra.mxu0 0.0
        %1346 = vmatpush.msra.mxu0 0.0
        %1347 = vmatpush.msra.mxu0 0.0
        %1348 = vmatpush.msra.mxu0 %v1323
        %1349 = vmatpush.msra.mxu0 %v1321
        %1350 = vmatpush.msra.mxu0 %v1319
        %1351 = vmatpush.msra.mxu0 %v1317
        %1352 = vmatmul.f32.gmra.mxu0 %v1334
        %v1353 = vpop.f32.mrf.mxu0
        %v1354 = vadd.f32 0.0, %v1353
        %1355 = vdwg.mxu0
        %1356 = vmatpush.msra.mxu0 0.0
        %1357 = vmatpush.msra.mxu0 0.0
        %1358 = vmatpush.msra.mxu0 0.0
        %1359 = vmatpush.msra.mxu0 0.0
        %1360 = vmatpush.msra.mxu0 0.0
        %1361 = vmatpush.msra.mxu0 0.0
        %1362 = vmatpush.msra.mxu0 0.0
        %1363 = vmatpush.msra.mxu0 0.0
        %1364 = vmatpush.msra.mxu0 0.0
        %1365 = vmatpush.msra.mxu0 0.0
        %1366 = vmatpush.msra.mxu0 0.0
        %1367 = vmatpush.msra.mxu0 0.0
        %1368 = vmatpush.msra.mxu0 %v1324
        %1369 = vmatpush.msra.mxu0 %v1322
        %1370 = vmatpush.msra.mxu0 %v1320
        %1371 = vmatpush.msra.mxu0 %v1318
        %1372 = vmatmul.f32.gmra.mxu0 %v1334
        %v1373 = vpop.f32.mrf.mxu0
        %v1374 = vadd.f32 0.0, %v1373
        %1375 = vdwg.mxu0
        %s1376 = scalar_lea.vmem %s7, 16
        %v1377 = vld [vmem:[%s1376] ss:$8 sm:$0x3]
        %vm1378 = vcmp.gt.f32.partialorder %v1377, 0.5
        %v1379 = vsel %vm1378, 1, 0
        %v1380 = vperm.slane %v1379, 0
        %v1381 = vperm.slane %v1379, 1
        %vm1382 = vcmp.eq.s32.totalorder %v1380, 1
        %vm1383 = vcmp.eq.s32.totalorder %v1381, 1
        %v1384 = vsel %vm1382, %v1354, 0.0
        %v1385 = vsel %vm1383, %v1374, 0.0
        %v1386 = vadd.f32 %v1288, %v1384
        %v1387 = vadd.f32 %v1289, %v1385
        %1389 = vst [vmem:[#allocation1] ss:$2 sm:$0xff] %v326
        %v1390 = vld.sshfl [vmem:[#allocation1] sm:$0xff pattern:$0x75316420]
        %v1391 = vld.sshfl [vmem:[#allocation1 + $0x8] sm:$0xff pattern:$0x75316420]
        %1394 = vst [vmem:[%s325] sm:$0xf] %v1390
        %1395 = vst [vmem:[%s325 + $0x8] sm:$0xf] %v1391
        %v1398 = vrot.slane %v1386, 4
        %v1399 = vrot.slane %v1387, 4
        %1402 = vst [vmem:[%s325] sm:$0xf0] %v1398
        %1403 = vst [vmem:[%s325 + $0x8] sm:$0xf0] %v1399
        %1404 = vst [vmem:[%s325 + $0x10] sm:$0xf] %v1398
        %1405 = vst [vmem:[%s325 + $0x18] sm:$0xf] %v1399
        %p1406 = scmp.lt.s32.totalorder %s22, 1
        %s1407 = scalar_select %p1406, %s22, 1
        %s1408 = smul.addr %s1407, 4
        %s1409 = smul.addr %s1408, 8
        %s1410 = scalar_lea.vmem %s8, %s1409
        // Predicated region
        $region57: #{tpu_custom_call.1} parent=51 // pred_check
          %p1411 = pneg %p213
        $region58: #{tpu_custom_call.1} parent=51 // pred_check_branch
          %1413 = sbr.rel (%p1411) target = $region60
        $region59: #{tpu_custom_call.1} parent=51 // pred_region
          _
        $region60: #{tpu_custom_call.1} parent=51 // pred_fallthru
          _
      $region52: #{tpu_custom_call.1} parent=5 // pred_fallthru
        _
      %p1414 = scmp.le.s32.totalorder 2, %s17
      // Predicated region
      $region61: #{tpu_custom_call.1} parent=5 // pred_check
        %p1415 = pneg %p1414
      $region62: #{tpu_custom_call.1} parent=5 // pred_check_branch
        %1417 = sbr.rel (%p1415) target = $region64
      $region63: #{tpu_custom_call.1} parent=5 // pred_region
        %s1418 = ssub.s32 %s17, 2
        // Predicated region
        $region65: #{tpu_custom_call.1} parent=63 // pred_check
          %p1419 = pneg %p219
        $region66: #{tpu_custom_call.1} parent=63 // pred_check_branch
          %1421 = sbr.rel (%p1419) target = $region68
        $region67: #{tpu_custom_call.1} parent=63 // pred_region
          %p1422 = scmp.lt.s32.totalorder %s23, 1
          %s1423 = scalar_select %p1422, %s23, 1
          %s1424 = smul.addr %s1423, 4
          %s1425 = smul.addr %s1424, 8
          %s1426 = scalar_lea.vmem %s8, %s1425
        $region68: #{tpu_custom_call.1} parent=63 // pred_fallthru
          _
      $region64: #{tpu_custom_call.1} parent=5 // pred_fallthru
        _
    $region6: #{tpu_custom_call.1} parent=1 // loop_footer
      %s21 = sadd.s32 1, %s17
    $region7: #{tpu_custom_call.1} parent=1 // loop_footer_branch
      %16 = sbr.rel target = $region3
    $region8: #{tpu_custom_call.1} parent=1 // loop_exit
      _
    %1427 = vsyncpa [#allocation4], 1
    %s1428 = scalar_lea.sflag [#allocation4], 1
    %1429 = vsyncpa %s1428, 1

</llo_original>
